<compile_context>
chip_gen: v5e
topology: v5e:2x2
jax: 0.10.0
libtpu: 0.0.40
codegen_flags: <defaults>
</compile_context>

<pallas_src>
import math

import jax
import jax.numpy as jnp
from jax import lax
from jax.experimental import pallas as pl
from jax.experimental.pallas import tpu as pltpu


_SQRT1_2 = 1.0 / math.sqrt(2.0)
_LN_EPS = 1e-12


def _erf(x):
    # Abramowitz & Stegun 7.1.26 rational approximation, |abs err| < 1.5e-7.
    # Only mul/add/select/exp + one reciprocal (EUP) -> lowers cleanly on Mosaic.
    p = 0.3275911
    a1, a2, a3, a4, a5 = (0.254829592, -0.284496736, 1.421413741,
                          -1.453152027, 1.061405429)
    sign = jnp.where(x >= 0.0, 1.0, -1.0)
    ax = jnp.abs(x)
    t = pl.reciprocal(1.0 + p * ax, approx=True)   # divide -> EUP slot, not VALU
    poly = ((((a5 * t + a4) * t + a3) * t + a2) * t + a1) * t
    return sign * (1.0 - poly * jnp.exp(-ax * ax))


def _gelu(x):
    # erf-based GELU (matches the PyTorch module's gelu), f32 elementwise.
    return 0.5 * x * (1.0 + _erf(x * _SQRT1_2))


def _layernorm_no_affine(h):
    u = jnp.mean(h, axis=-1, keepdims=True)
    var = jnp.mean((h - u) * (h - u), axis=-1, keepdims=True)
    return (h - u) * lax.rsqrt(var + _LN_EPS)      # rsqrt -> EUP slot


def pretraining_heads_kernel(x_ref, pooled_ref,
                             wd_ref, bd_ref, g_ref, b_ref,
                             wdec_ref, bdec_ref,
                             wsr_ref, bsr_ref,
                             logits_ref, seqrel_ref):
    H = x_ref.shape[-1]
    x = x_ref[...]                                                   # (tm, H) f32
    # Fused dense of BOTH MLM heads: one bf16 MXU matmul, f32 accumulation.
    h = jnp.dot(x.astype(jnp.bfloat16), wd_ref[...],
                preferred_element_type=jnp.float32) + bd_ref[...]    # (tm, 2H) f32
    h = _gelu(h)                                                     # f32 (VPU+EUP)
    # Per-head LayerNorm over the two halves (lane-aligned slices), then affine.
    hn = jnp.concatenate([_layernorm_no_affine(h[:, :H]),
                          _layernorm_no_affine(h[:, H:])], axis=-1)  # (tm, 2H)
    hn = g_ref[...] * hn + b_ref[...]
    # Block-diagonal decoder: both heads' logits land in ONE lane-dense tile
    # (head-1 in lanes [0:V], head-2 in lanes [V:V+Vss], rest zero-padded).
    logits_ref[...] = jnp.dot(hn.astype(jnp.bfloat16), wdec_ref[...],
                              preferred_element_type=jnp.float32) + bdec_ref[...]
    # seq_relationship = Linear(H, 2) on pooled_output; tiny, so recompute every
    # grid step (keeps each output block valid under megacore sharding).
    seqrel_ref[...] = jnp.dot(pooled_ref[...].astype(jnp.bfloat16), wsr_ref[...],
                              preferred_element_type=jnp.float32) + bsr_ref[...]


def _round_up(x, m):
    return (x + m - 1) // m * m


def _pad_rows(x, rows):
    pad = rows - x.shape[0]
    if pad == 0:
        return x
    return jnp.pad(x, ((0, pad), (0, 0)))


def prepare_params(params):
    """One-time preprocessing of the PyTorch-layout weights (call once, reuse).

    params layout (PyTorch):
      "mlm" / "mlm_ss": dense_w (H,H), dense_b (H,), ln_g (H,), ln_b (H,),
                        decoder_w (V,H), decoder_b (V,)
      "seq_rel": w (2,H), b (2,)
    """
    p1, p2, psr = params["mlm"], params["mlm_ss"], params["seq_rel"]
    H = p1["dense_w"].shape[0]
    V = p1["decoder_w"].shape[0]
    Vss = p2["decoder_w"].shape[0]
    Vc = _round_up(V + Vss, 128)                    # merged, lane-dense logits width
    f32, bf16 = jnp.float32, jnp.bfloat16

    # Fused dense transform of both heads: (H, 2H), bf16 for the MXU.
    w_dense = jnp.concatenate([p1["dense_w"].T, p2["dense_w"].T], axis=1).astype(bf16)
    b_dense = jnp.concatenate([p1["dense_b"], p2["dense_b"]]).reshape(1, 2 * H).astype(f32)
    ln_g = jnp.concatenate([p1["ln_g"], p2["ln_g"]]).reshape(1, 2 * H).astype(f32)
    ln_b = jnp.concatenate([p1["ln_b"], p2["ln_b"]]).reshape(1, 2 * H).astype(f32)

    # Block-diagonal decoder: rows [0:H] feed lanes [0:V], rows [H:2H] feed [V:V+Vss].
    w_dec = jnp.zeros((2 * H, Vc), f32)
    w_dec = w_dec.at[:H, :V].set(p1["decoder_w"].T.astype(f32))
    w_dec = w_dec.at[H:, V:V + Vss].set(p2["decoder_w"].T.astype(f32))
    w_dec = w_dec.astype(bf16)
    b_dec = jnp.zeros((1, Vc), f32)
    b_dec = b_dec.at[0, :V].set(p1["decoder_b"].astype(f32))
    b_dec = b_dec.at[0, V:V + Vss].set(p2["decoder_b"].astype(f32))

    # seq_relationship weights padded to 128 output lanes (zero columns).
    w_sr = jnp.zeros((H, 128), f32).at[:, :2].set(psr["w"].T.astype(f32)).astype(bf16)
    b_sr = jnp.zeros((1, 128), f32).at[0, :2].set(psr["b"].astype(f32))

    return {"H": H, "V": V, "Vss": Vss, "Vc": Vc,
            "w_dense": w_dense, "b_dense": b_dense, "ln_g": ln_g, "ln_b": ln_b,
            "w_dec": w_dec, "b_dec": b_dec, "w_sr": w_sr, "b_sr": b_sr}


def rnabert_pretraining_heads(sequence_output, pooled_output, prepared, *, tm=256):
    """Pallas forward of RnaBertPreTrainingHeads.

    Returns (logits (B,S,V), logits_ss (B,S,Vss), seq_relationship_score (B,2)).

    tm guidance: v5e -> 128 (4x128 MXU rows already full); v6e -> 256-512;
    v7x -> 256 and keep >= 2 grid steps so both TensorCores get work.
    """
    H, V, Vss, Vc = prepared["H"], prepared["V"], prepared["Vss"], prepared["Vc"]
    B, S, _ = sequence_output.shape
    rows = B * S

    tm = max(8, min(tm, _round_up(rows, 8)))
    rows_p = _round_up(rows, tm)
    n_tiles = rows_p // tm
    # Keep at least 2 grid steps when there is enough work (v7x megacore sharding).
    if n_tiles == 1 and rows > 256:
        tm = _round_up((rows + 1) // 2, 8)
        rows_p = _round_up(rows, tm)
        n_tiles = rows_p // tm

    # x stays f32 into the kernel (cast to bf16 in-register) to avoid an extra
    # wrapper-side HBM pass; padding is a no-op when tm divides B*S.
    x = _pad_rows(sequence_output.reshape(rows, H).astype(jnp.float32), rows_p)
    bp = _round_up(B, 8)
    pooled = _pad_rows(pooled_output.astype(jnp.float32), bp)

    consts = [pooled,
              prepared["w_dense"], prepared["b_dense"],
              prepared["ln_g"], prepared["ln_b"],
              prepared["w_dec"], prepared["b_dec"],
              prepared["w_sr"], prepared["b_sr"]]

    def run(single_buffer_consts):
        def const_spec(shape):
            nd = len(shape)
            idx = lambda i, _n=nd: (0,) * _n
            if single_buffer_consts:
                # Block index never changes across the grid -> single-buffer to
                # halve the VMEM footprint of the weight copies.
                return pl.BlockSpec(shape, idx, pipeline_mode=pl.Buffered(1))
            return pl.BlockSpec(shape, idx)

        return pl.pallas_call(
            pretraining_heads_kernel,
            out_shape=(jax.ShapeDtypeStruct((rows_p, Vc), jnp.float32),
                       jax.ShapeDtypeStruct((n_tiles * bp, 128), jnp.float32)),
            grid=(n_tiles,),
            in_specs=[pl.BlockSpec((tm, H), lambda i: (i, 0))]
                     + [const_spec(a.shape) for a in consts],
            out_specs=(pl.BlockSpec((tm, Vc), lambda i: (i, 0)),
                       pl.BlockSpec((bp, 128), lambda i: (i, 0))),
            compiler_params=pltpu.CompilerParams(
                dimension_semantics=("parallel",),
                vmem_limit_bytes=48 * 1024 * 1024),
        )(x, *consts)

    try:
        logits_cat, seqrel = run(True)
    except Exception:
        # Fallback for jax builds where pipeline_mode=pl.Buffered(1) is not
        # supported on the TPU pallas_call path; semantics are identical.
        logits_cat, seqrel = run(False)

    # NOTE: a padding-aware consumer could use `logits_cat` directly
    # (head-1 in lanes [0:V], head-2 in [V:V+Vss]) and skip these slices.
    logits = logits_cat[:rows, :V].reshape(B, S, V)
    logits_ss = logits_cat[:rows, V:V + Vss].reshape(B, S, Vss)
    seq_relationship_score = seqrel[:B, :2]
    return logits, logits_ss, seq_relationship_score


# ----------------------------- pure-JAX reference -----------------------------

def reference_pretraining_heads(sequence_output, pooled_output, params):
    hp = jax.lax.Precision.HIGHEST

    def mlm_head(x, p):
        h = jnp.matmul(x, p["dense_w"].T, precision=hp) + p["dense_b"]
        h = jax.nn.gelu(h, approximate=False)                  # erf-based gelu
        u = h.mean(-1, keepdims=True)
        s = ((h - u) ** 2).mean(-1, keepdims=True)
        hn = (h - u) / jnp.sqrt(s + _LN_EPS)
        hn = p["ln_g"] * hn + p["ln_b"]
        return jnp.matmul(hn, p["decoder_w"].T, precision=hp) + p["decoder_b"]

    logits = mlm_head(sequence_output, params["mlm"])
    logits_ss = mlm_head(sequence_output, params["mlm_ss"])
    seq = (jnp.matmul(pooled_output, params["seq_rel"]["w"].T, precision=hp)
           + params["seq_rel"]["b"])
    return logits, logits_ss, seq


if __name__ == "__main__":
    # small synthetic RnaBertConfig-like sizes
    B, S, H = 2, 8, 128          # batch, seq, hidden
    V, Vss = 32, 16              # vocab_size, ss_vocab_size

    key = jax.random.PRNGKey(0)
    k_seq, k_pool, k_h1, k_h2, k_srw, k_srb = jax.random.split(key, 6)

    def make_head_params(k, vocab):
        ks = jax.random.split(k, 6)
        return {
            "dense_w": 0.02 * jax.random.normal(ks[0], (H, H), jnp.float32),
            "dense_b": 0.02 * jax.random.normal(ks[1], (H,), jnp.float32),
            "ln_g": 1.0 + 0.05 * jax.random.normal(ks[2], (H,), jnp.float32),
            "ln_b": 0.05 * jax.random.normal(ks[3], (H,), jnp.float32),
            "decoder_w": 0.02 * jax.random.normal(ks[4], (vocab, H), jnp.float32),
            "decoder_b": 0.02 * jax.random.normal(ks[5], (vocab,), jnp.float32),
        }

    params = {
        "mlm": make_head_params(k_h1, V),
        "mlm_ss": make_head_params(k_h2, Vss),
        "seq_rel": {
            "w": 0.02 * jax.random.normal(k_srw, (2, H), jnp.float32),
            "b": 0.02 * jax.random.normal(k_srb, (2,), jnp.float32),
        },
    }

    sequence_output = jax.random.normal(k_seq, (B, S, H), jnp.float32)
    pooled_output = jnp.tanh(jax.random.normal(k_pool, (B, H), jnp.float32))

    prepared = prepare_params(params)        # one-time weight preprocessing
    logits, logits_ss, seq_rel = rnabert_pretraining_heads(
        sequence_output, pooled_output, prepared)
    logits, logits_ss, seq_rel = jax.block_until_ready((logits, logits_ss, seq_rel))

    ref_logits, ref_logits_ss, ref_seq = reference_pretraining_heads(
        sequence_output, pooled_output, params)

    assert logits.shape == (B, S, V)
    assert logits_ss.shape == (B, S, Vss)
    assert seq_rel.shape == (B, 2)
    # Tolerance sized for bf16 MXU inputs with f32 accumulation vs the f32
    # Precision.HIGHEST reference (per the perf feedback's bf16 recommendation).
    assert jnp.allclose(logits, ref_logits, atol=1e-2, rtol=1e-2), "logits mismatch"
    assert jnp.allclose(logits_ss, ref_logits_ss, atol=1e-2, rtol=1e-2), "logits_ss mismatch"
    assert jnp.allclose(seq_rel, ref_seq, atol=1e-2, rtol=1e-2), "seq_relationship mismatch"
    print("KERNEL_OK")
</pallas_src>

<mosaic_0001>
module attributes {stable_mosaic.version = 11 : i64} {
  func.func @pretraining_heads_kernel(%arg0: i32, %arg1: memref<16x128xf32, #tpu.memory_space<vmem>>, %arg2: memref<8x128xf32, #tpu.memory_space<vmem>>, %arg3: memref<128x256xbf16, #tpu.memory_space<vmem>>, %arg4: memref<1x256xf32, #tpu.memory_space<vmem>>, %arg5: memref<1x256xf32, #tpu.memory_space<vmem>>, %arg6: memref<1x256xf32, #tpu.memory_space<vmem>>, %arg7: memref<256x128xbf16, #tpu.memory_space<vmem>>, %arg8: memref<1x128xf32, #tpu.memory_space<vmem>>, %arg9: memref<128x128xbf16, #tpu.memory_space<vmem>>, %arg10: memref<1x128xf32, #tpu.memory_space<vmem>>, %arg11: memref<16x128xf32, #tpu.memory_space<vmem>>, %arg12: memref<8x128xf32, #tpu.memory_space<vmem>>) attributes {dimension_semantics = [#tpu.dimension_semantics<parallel>], iteration_bounds = array<i64: 1>, scalar_prefetch = 0 : i64, scratch_operands = 0 : i64, tpu.core_type = #tpu.core_type<tc>, window_params = [{transform_indices = @transform_0, window_bounds = array<i64: 16, 128>}, {pipeline_mode = #tpu.pipeline_mode<synchronous>, transform_indices = @transform_1, window_bounds = array<i64: 8, 128>}, {pipeline_mode = #tpu.pipeline_mode<synchronous>, transform_indices = @transform_2, window_bounds = array<i64: 128, 256>}, {pipeline_mode = #tpu.pipeline_mode<synchronous>, transform_indices = @transform_3, window_bounds = array<i64: 1, 256>}, {pipeline_mode = #tpu.pipeline_mode<synchronous>, transform_indices = @transform_4, window_bounds = array<i64: 1, 256>}, {pipeline_mode = #tpu.pipeline_mode<synchronous>, transform_indices = @transform_5, window_bounds = array<i64: 1, 256>}, {pipeline_mode = #tpu.pipeline_mode<synchronous>, transform_indices = @transform_6, window_bounds = array<i64: 256, 128>}, {pipeline_mode = #tpu.pipeline_mode<synchronous>, transform_indices = @transform_7, window_bounds = array<i64: 1, 128>}, {pipeline_mode = #tpu.pipeline_mode<synchronous>, transform_indices = @transform_8, window_bounds = array<i64: 128, 128>}, {pipeline_mode = #tpu.pipeline_mode<synchronous>, transform_indices = @transform_9, window_bounds = array<i64: 1, 128>}, {transform_indices = @transform_10, window_bounds = array<i64: 16, 128>}, {transform_indices = @transform_11, window_bounds = array<i64: 8, 128>}]} {
    %c0 = arith.constant 0 : index
    %c0_0 = arith.constant 0 : index
    %0 = vector.load %arg1[%c0, %c0_0] : memref<16x128xf32, #tpu.memory_space<vmem>>, vector<16x128xf32>
    %1 = arith.truncf %0 : vector<16x128xf32> to vector<16x128xbf16>
    %c0_1 = arith.constant 0 : index
    %c0_2 = arith.constant 0 : index
    %2 = vector.load %arg3[%c0_1, %c0_2] : memref<128x256xbf16, #tpu.memory_space<vmem>>, vector<128x256xbf16>
    %cst = arith.constant dense<0.000000e+00> : vector<16x256xf32>
    %3 = tpu.matmul %1, %2, %cst {dimension_numbers = #tpu.dot_dimension_numbers<[1], [0], [0], [1], [0, 0, 1, 1], [], []>} : vector<16x128xbf16>, vector<128x256xbf16>, vector<16x256xf32> -> vector<16x256xf32>
    %c0_3 = arith.constant 0 : index
    %c0_4 = arith.constant 0 : index
    %4 = vector.load %arg4[%c0_3, %c0_4] : memref<1x256xf32, #tpu.memory_space<vmem>>, vector<1x256xf32>
    %5 = vector.broadcast %4 : vector<1x256xf32> to vector<16x256xf32>
    %6 = arith.addf %3, %5 : vector<16x256xf32>
    %cst_5 = arith.constant 5.000000e-01 : f32
    %7 = vector.broadcast %cst_5 : f32 to vector<16x256xf32>
    %8 = arith.mulf %7, %6 : vector<16x256xf32>
    %cst_6 = arith.constant 0.707106769 : f32
    %9 = vector.broadcast %cst_6 : f32 to vector<16x256xf32>
    %10 = arith.mulf %6, %9 : vector<16x256xf32>
    %cst_7 = arith.constant 0.000000e+00 : f32
    %11 = vector.broadcast %cst_7 : f32 to vector<16x256xf32>
    %12 = arith.cmpf oge, %10, %11 : vector<16x256xf32>
    %cst_8 = arith.constant 1.000000e+00 : f32
    %cst_9 = arith.constant -1.000000e+00 : f32
    %13 = vector.broadcast %cst_8 : f32 to vector<16x256xf32>
    %14 = vector.broadcast %cst_9 : f32 to vector<16x256xf32>
    %15 = arith.select %12, %13, %14 : vector<16x256xi1>, vector<16x256xf32>
    %16 = math.absf %10 : vector<16x256xf32>
    %cst_10 = arith.constant 0.327591091 : f32
    %17 = vector.broadcast %cst_10 : f32 to vector<16x256xf32>
    %18 = arith.mulf %17, %16 : vector<16x256xf32>
    %cst_11 = arith.constant 1.000000e+00 : f32
    %19 = vector.broadcast %cst_11 : f32 to vector<16x256xf32>
    %20 = arith.addf %19, %18 : vector<16x256xf32>
    %21 = tpu.reciprocal %20 {approx = true} : vector<16x256xf32> -> vector<16x256xf32>
    %cst_12 = arith.constant 1.06140542 : f32
    %22 = vector.broadcast %cst_12 : f32 to vector<16x256xf32>
    %23 = arith.mulf %22, %21 : vector<16x256xf32>
    %cst_13 = arith.constant -1.45315206 : f32
    %24 = vector.broadcast %cst_13 : f32 to vector<16x256xf32>
    %25 = arith.addf %23, %24 : vector<16x256xf32>
    %26 = arith.mulf %25, %21 : vector<16x256xf32>
    %cst_14 = arith.constant 1.42141378 : f32
    %27 = vector.broadcast %cst_14 : f32 to vector<16x256xf32>
    %28 = arith.addf %26, %27 : vector<16x256xf32>
    %29 = arith.mulf %28, %21 : vector<16x256xf32>
    %cst_15 = arith.constant -0.284496725 : f32
    %30 = vector.broadcast %cst_15 : f32 to vector<16x256xf32>
    %31 = arith.addf %29, %30 : vector<16x256xf32>
    %32 = arith.mulf %31, %21 : vector<16x256xf32>
    %cst_16 = arith.constant 0.254829586 : f32
    %33 = vector.broadcast %cst_16 : f32 to vector<16x256xf32>
    %34 = arith.addf %32, %33 : vector<16x256xf32>
    %35 = arith.mulf %34, %21 : vector<16x256xf32>
    %cst_17 = arith.constant 0.000000e+00 : f32
    %36 = vector.broadcast %cst_17 : f32 to vector<16x256xf32>
    %37 = arith.subf %36, %16 : vector<16x256xf32>
    %38 = arith.mulf %37, %16 : vector<16x256xf32>
    %39 = math.exp %38 : vector<16x256xf32>
    %40 = arith.mulf %35, %39 : vector<16x256xf32>
    %cst_18 = arith.constant 1.000000e+00 : f32
    %41 = vector.broadcast %cst_18 : f32 to vector<16x256xf32>
    %42 = arith.subf %41, %40 : vector<16x256xf32>
    %43 = arith.mulf %15, %42 : vector<16x256xf32>
    %cst_19 = arith.constant 1.000000e+00 : f32
    %44 = vector.broadcast %cst_19 : f32 to vector<16x256xf32>
    %45 = arith.addf %44, %43 : vector<16x256xf32>
    %46 = arith.mulf %8, %45 : vector<16x256xf32>
    %47 = vector.extract_strided_slice %46 {offsets = [0, 0], sizes = [16, 128], strides = [1, 1]} : vector<16x256xf32> to vector<16x128xf32>
    %cst_20 = arith.constant dense<0.000000e+00> : vector<16xf32>
    %48 = vector.multi_reduction <add>, %47, %cst_20 [1] : vector<16x128xf32> to vector<16xf32>
    %49 = vector.shape_cast %48 : vector<16xf32> to vector<16x1xf32>
    %cst_21 = arith.constant 1.280000e+02 : f32
    %50 = vector.broadcast %cst_21 : f32 to vector<16x1xf32>
    %51 = arith.divf %49, %50 : vector<16x1xf32>
    %52 = vector.broadcast %51 : vector<16x1xf32> to vector<16x128xf32>
    %53 = arith.subf %47, %52 : vector<16x128xf32>
    %54 = vector.broadcast %51 : vector<16x1xf32> to vector<16x128xf32>
    %55 = arith.subf %47, %54 : vector<16x128xf32>
    %56 = arith.mulf %53, %55 : vector<16x128xf32>
    %cst_22 = arith.constant dense<0.000000e+00> : vector<16xf32>
    %57 = vector.multi_reduction <add>, %56, %cst_22 [1] : vector<16x128xf32> to vector<16xf32>
    %58 = vector.shape_cast %57 : vector<16xf32> to vector<16x1xf32>
    %cst_23 = arith.constant 1.280000e+02 : f32
    %59 = vector.broadcast %cst_23 : f32 to vector<16x1xf32>
    %60 = arith.divf %58, %59 : vector<16x1xf32>
    %61 = vector.broadcast %51 : vector<16x1xf32> to vector<16x128xf32>
    %62 = arith.subf %47, %61 : vector<16x128xf32>
    %cst_24 = arith.constant 9.99999996E-13 : f32
    %63 = vector.broadcast %cst_24 : f32 to vector<16x1xf32>
    %64 = arith.addf %60, %63 : vector<16x1xf32>
    %65 = math.rsqrt %64 : vector<16x1xf32>
    %66 = vector.broadcast %65 : vector<16x1xf32> to vector<16x128xf32>
    %67 = arith.mulf %62, %66 : vector<16x128xf32>
    %68 = vector.extract_strided_slice %46 {offsets = [0, 128], sizes = [16, 128], strides = [1, 1]} : vector<16x256xf32> to vector<16x128xf32>
    %cst_25 = arith.constant dense<0.000000e+00> : vector<16xf32>
    %69 = vector.multi_reduction <add>, %68, %cst_25 [1] : vector<16x128xf32> to vector<16xf32>
    %70 = vector.shape_cast %69 : vector<16xf32> to vector<16x1xf32>
    %cst_26 = arith.constant 1.280000e+02 : f32
    %71 = vector.broadcast %cst_26 : f32 to vector<16x1xf32>
    %72 = arith.divf %70, %71 : vector<16x1xf32>
    %73 = vector.broadcast %72 : vector<16x1xf32> to vector<16x128xf32>
    %74 = arith.subf %68, %73 : vector<16x128xf32>
    %75 = vector.broadcast %72 : vector<16x1xf32> to vector<16x128xf32>
    %76 = arith.subf %68, %75 : vector<16x128xf32>
    %77 = arith.mulf %74, %76 : vector<16x128xf32>
    %cst_27 = arith.constant dense<0.000000e+00> : vector<16xf32>
    %78 = vector.multi_reduction <add>, %77, %cst_27 [1] : vector<16x128xf32> to vector<16xf32>
    %79 = vector.shape_cast %78 : vector<16xf32> to vector<16x1xf32>
    %cst_28 = arith.constant 1.280000e+02 : f32
    %80 = vector.broadcast %cst_28 : f32 to vector<16x1xf32>
    %81 = arith.divf %79, %80 : vector<16x1xf32>
    %82 = vector.broadcast %72 : vector<16x1xf32> to vector<16x128xf32>
    %83 = arith.subf %68, %82 : vector<16x128xf32>
    %cst_29 = arith.constant 9.99999996E-13 : f32
    %84 = vector.broadcast %cst_29 : f32 to vector<16x1xf32>
    %85 = arith.addf %81, %84 : vector<16x1xf32>
    %86 = math.rsqrt %85 : vector<16x1xf32>
    %87 = vector.broadcast %86 : vector<16x1xf32> to vector<16x128xf32>
    %88 = arith.mulf %83, %87 : vector<16x128xf32>
    %89 = tpu.concatenate %67, %88 in 1 : vector<16x128xf32>, vector<16x128xf32> -> vector<16x256xf32>
    %c0_30 = arith.constant 0 : index
    %c0_31 = arith.constant 0 : index
    %90 = vector.load %arg5[%c0_30, %c0_31] : memref<1x256xf32, #tpu.memory_space<vmem>>, vector<1x256xf32>
    %91 = vector.broadcast %90 : vector<1x256xf32> to vector<16x256xf32>
    %92 = arith.mulf %91, %89 : vector<16x256xf32>
    %c0_32 = arith.constant 0 : index
    %c0_33 = arith.constant 0 : index
    %93 = vector.load %arg6[%c0_32, %c0_33] : memref<1x256xf32, #tpu.memory_space<vmem>>, vector<1x256xf32>
    %94 = vector.broadcast %93 : vector<1x256xf32> to vector<16x256xf32>
    %95 = arith.addf %92, %94 : vector<16x256xf32>
    %96 = arith.truncf %95 : vector<16x256xf32> to vector<16x256xbf16>
    %c0_34 = arith.constant 0 : index
    %c0_35 = arith.constant 0 : index
    %97 = vector.load %arg7[%c0_34, %c0_35] : memref<256x128xbf16, #tpu.memory_space<vmem>>, vector<256x128xbf16>
    %cst_36 = arith.constant dense<0.000000e+00> : vector<16x128xf32>
    %98 = tpu.matmul %96, %97, %cst_36 {dimension_numbers = #tpu.dot_dimension_numbers<[1], [0], [0], [1], [0, 0, 1, 1], [], []>} : vector<16x256xbf16>, vector<256x128xbf16>, vector<16x128xf32> -> vector<16x128xf32>
    %c0_37 = arith.constant 0 : index
    %c0_38 = arith.constant 0 : index
    %99 = vector.load %arg8[%c0_37, %c0_38] : memref<1x128xf32, #tpu.memory_space<vmem>>, vector<1x128xf32>
    %100 = vector.broadcast %99 : vector<1x128xf32> to vector<16x128xf32>
    %101 = arith.addf %98, %100 : vector<16x128xf32>
    %c0_39 = arith.constant 0 : index
    %c0_40 = arith.constant 0 : index
    %102 = vector.load %arg11[%c0_39, %c0_40] : memref<16x128xf32, #tpu.memory_space<vmem>>, vector<16x128xf32>
    tpu.vector_store %arg11[%c0_39, %c0_40], %101 {strides = array<i32>} : memref<16x128xf32, #tpu.memory_space<vmem>>, vector<16x128xf32>,
    %c0_41 = arith.constant 0 : index
    %c0_42 = arith.constant 0 : index
    %103 = vector.load %arg2[%c0_41, %c0_42] : memref<8x128xf32, #tpu.memory_space<vmem>>, vector<8x128xf32>
    %104 = arith.truncf %103 : vector<8x128xf32> to vector<8x128xbf16>
    %c0_43 = arith.constant 0 : index
    %c0_44 = arith.constant 0 : index
    %105 = vector.load %arg9[%c0_43, %c0_44] : memref<128x128xbf16, #tpu.memory_space<vmem>>, vector<128x128xbf16>
    %cst_45 = arith.constant dense<0.000000e+00> : vector<8x128xf32>
    %106 = tpu.matmul %104, %105, %cst_45 {dimension_numbers = #tpu.dot_dimension_numbers<[1], [0], [0], [1], [0, 0, 1, 1], [], []>} : vector<8x128xbf16>, vector<128x128xbf16>, vector<8x128xf32> -> vector<8x128xf32>
    %c0_46 = arith.constant 0 : index
    %c0_47 = arith.constant 0 : index
    %107 = vector.load %arg10[%c0_46, %c0_47] : memref<1x128xf32, #tpu.memory_space<vmem>>, vector<1x128xf32>
    %108 = vector.broadcast %107 : vector<1x128xf32> to vector<8x128xf32>
    %109 = arith.addf %106, %108 : vector<8x128xf32>
    %c0_48 = arith.constant 0 : index
    %c0_49 = arith.constant 0 : index
    %110 = vector.load %arg12[%c0_48, %c0_49] : memref<8x128xf32, #tpu.memory_space<vmem>>, vector<8x128xf32>
    tpu.vector_store %arg12[%c0_48, %c0_49], %109 {strides = array<i32>} : memref<8x128xf32, #tpu.memory_space<vmem>>, vector<8x128xf32>,
    return
  }
  func.func @transform_0(%arg0: i32) -> (i32, i32) {
    %c0_i32 = arith.constant 0 : i32
    %c0_i32_0 = arith.constant 0 : i32
    return %arg0, %c0_i32 : i32, i32
  }
  func.func @transform_1(%arg0: i32) -> (i32, i32) {
    %c0_i32 = arith.constant 0 : i32
    %c0_i32_0 = arith.constant 0 : i32
    %c0_i32_1 = arith.constant 0 : i32
    return %c0_i32, %c0_i32_0 : i32, i32
  }
  func.func @transform_2(%arg0: i32) -> (i32, i32) {
    %c0_i32 = arith.constant 0 : i32
    %c0_i32_0 = arith.constant 0 : i32
    %c0_i32_1 = arith.constant 0 : i32
    return %c0_i32, %c0_i32_0 : i32, i32
  }
  func.func @transform_3(%arg0: i32) -> (i32, i32) {
    %c0_i32 = arith.constant 0 : i32
    %c0_i32_0 = arith.constant 0 : i32
    %c0_i32_1 = arith.constant 0 : i32
    return %c0_i32, %c0_i32_0 : i32, i32
  }
  func.func @transform_4(%arg0: i32) -> (i32, i32) {
    %c0_i32 = arith.constant 0 : i32
    %c0_i32_0 = arith.constant 0 : i32
    %c0_i32_1 = arith.constant 0 : i32
    return %c0_i32, %c0_i32_0 : i32, i32
  }
  func.func @transform_5(%arg0: i32) -> (i32, i32) {
    %c0_i32 = arith.constant 0 : i32
    %c0_i32_0 = arith.constant 0 : i32
    %c0_i32_1 = arith.constant 0 : i32
    return %c0_i32, %c0_i32_0 : i32, i32
  }
  func.func @transform_6(%arg0: i32) -> (i32, i32) {
    %c0_i32 = arith.constant 0 : i32
    %c0_i32_0 = arith.constant 0 : i32
    %c0_i32_1 = arith.constant 0 : i32
    return %c0_i32, %c0_i32_0 : i32, i32
  }
  func.func @transform_7(%arg0: i32) -> (i32, i32) {
    %c0_i32 = arith.constant 0 : i32
    %c0_i32_0 = arith.constant 0 : i32
    %c0_i32_1 = arith.constant 0 : i32
    return %c0_i32, %c0_i32_0 : i32, i32
  }
  func.func @transform_8(%arg0: i32) -> (i32, i32) {
    %c0_i32 = arith.constant 0 : i32
    %c0_i32_0 = arith.constant 0 : i32
    %c0_i32_1 = arith.constant 0 : i32
    return %c0_i32, %c0_i32_0 : i32, i32
  }
  func.func @transform_9(%arg0: i32) -> (i32, i32) {
    %c0_i32 = arith.constant 0 : i32
    %c0_i32_0 = arith.constant 0 : i32
    %c0_i32_1 = arith.constant 0 : i32
    return %c0_i32, %c0_i32_0 : i32, i32
  }
  func.func @transform_10(%arg0: i32) -> (i32, i32) {
    %c0_i32 = arith.constant 0 : i32
    %c0_i32_0 = arith.constant 0 : i32
    return %arg0, %c0_i32 : i32, i32
  }
  func.func @transform_11(%arg0: i32) -> (i32, i32) {
    %c0_i32 = arith.constant 0 : i32
    %c0_i32_0 = arith.constant 0 : i32
    return %arg0, %c0_i32 : i32, i32
  }
}

module attributes {stable_mosaic.version = 11 : i64} {
  func.func @pretraining_heads_kernel(%arg0: i32, %arg1: memref<16x128xf32, #tpu.memory_space<vmem>>, %arg2: memref<8x128xf32, #tpu.memory_space<vmem>>, %arg3: memref<128x256xbf16, #tpu.memory_space<vmem>>, %arg4: memref<1x256xf32, #tpu.memory_space<vmem>>, %arg5: memref<1x256xf32, #tpu.memory_space<vmem>>, %arg6: memref<1x256xf32, #tpu.memory_space<vmem>>, %arg7: memref<256x128xbf16, #tpu.memory_space<vmem>>, %arg8: memref<1x128xf32, #tpu.memory_space<vmem>>, %arg9: memref<128x128xbf16, #tpu.memory_space<vmem>>, %arg10: memref<1x128xf32, #tpu.memory_space<vmem>>, %arg11: memref<16x128xf32, #tpu.memory_space<vmem>>, %arg12: memref<8x128xf32, #tpu.memory_space<vmem>>) attributes {dimension_semantics = [#tpu.dimension_semantics<parallel>], iteration_bounds = array<i64: 1>, scalar_prefetch = 0 : i64, scratch_operands = 0 : i64, tpu.core_type = #tpu.core_type<tc>, window_params = [{transform_indices = @transform_0, window_bounds = array<i64: 16, 128>}, {pipeline_mode = #tpu.pipeline_mode<synchronous>, transform_indices = @transform_1, window_bounds = array<i64: 8, 128>}, {pipeline_mode = #tpu.pipeline_mode<synchronous>, transform_indices = @transform_2, window_bounds = array<i64: 128, 256>}, {pipeline_mode = #tpu.pipeline_mode<synchronous>, transform_indices = @transform_3, window_bounds = array<i64: 1, 256>}, {pipeline_mode = #tpu.pipeline_mode<synchronous>, transform_indices = @transform_4, window_bounds = array<i64: 1, 256>}, {pipeline_mode = #tpu.pipeline_mode<synchronous>, transform_indices = @transform_5, window_bounds = array<i64: 1, 256>}, {pipeline_mode = #tpu.pipeline_mode<synchronous>, transform_indices = @transform_6, window_bounds = array<i64: 256, 128>}, {pipeline_mode = #tpu.pipeline_mode<synchronous>, transform_indices = @transform_7, window_bounds = array<i64: 1, 128>}, {pipeline_mode = #tpu.pipeline_mode<synchronous>, transform_indices = @transform_8, window_bounds = array<i64: 128, 128>}, {pipeline_mode = #tpu.pipeline_mode<synchronous>, transform_indices = @transform_9, window_bounds = array<i64: 1, 128>}, {transform_indices = @transform_10, window_bounds = array<i64: 16, 128>}, {transform_indices = @transform_11, window_bounds = array<i64: 8, 128>}]} {
    %c0 = arith.constant 0 : index
    %c0_0 = arith.constant 0 : index
    %0 = vector.load %arg1[%c0, %c0_0] : memref<16x128xf32, #tpu.memory_space<vmem>>, vector<16x128xf32>
    %1 = arith.truncf %0 : vector<16x128xf32> to vector<16x128xbf16>
    %c0_1 = arith.constant 0 : index
    %c0_2 = arith.constant 0 : index
    %2 = vector.load %arg3[%c0_1, %c0_2] : memref<128x256xbf16, #tpu.memory_space<vmem>>, vector<128x256xbf16>
    %cst = arith.constant dense<0.000000e+00> : vector<16x256xf32>
    %3 = tpu.matmul %1, %2, %cst {dimension_numbers = #tpu.dot_dimension_numbers<[1], [0], [0], [1], [0, 0, 1, 1], [], []>} : vector<16x128xbf16>, vector<128x256xbf16>, vector<16x256xf32> -> vector<16x256xf32>
    %c0_3 = arith.constant 0 : index
    %c0_4 = arith.constant 0 : index
    %4 = vector.load %arg4[%c0_3, %c0_4] : memref<1x256xf32, #tpu.memory_space<vmem>>, vector<1x256xf32>
    %5 = vector.broadcast %4 : vector<1x256xf32> to vector<16x256xf32>
    %6 = arith.addf %3, %5 : vector<16x256xf32>
    %cst_5 = arith.constant 5.000000e-01 : f32
    %7 = vector.broadcast %cst_5 : f32 to vector<16x256xf32>
    %8 = arith.mulf %7, %6 : vector<16x256xf32>
    %cst_6 = arith.constant 0.707106769 : f32
    %9 = vector.broadcast %cst_6 : f32 to vector<16x256xf32>
    %10 = arith.mulf %6, %9 : vector<16x256xf32>
    %cst_7 = arith.constant 0.000000e+00 : f32
    %11 = vector.broadcast %cst_7 : f32 to vector<16x256xf32>
    %12 = arith.cmpf oge, %10, %11 : vector<16x256xf32>
    %cst_8 = arith.constant 1.000000e+00 : f32
    %cst_9 = arith.constant -1.000000e+00 : f32
    %13 = vector.broadcast %cst_8 : f32 to vector<16x256xf32>
    %14 = vector.broadcast %cst_9 : f32 to vector<16x256xf32>
    %15 = arith.select %12, %13, %14 : vector<16x256xi1>, vector<16x256xf32>
    %16 = math.absf %10 : vector<16x256xf32>
    %cst_10 = arith.constant 0.327591091 : f32
    %17 = vector.broadcast %cst_10 : f32 to vector<16x256xf32>
    %18 = arith.mulf %17, %16 : vector<16x256xf32>
    %cst_11 = arith.constant 1.000000e+00 : f32
    %19 = vector.broadcast %cst_11 : f32 to vector<16x256xf32>
    %20 = arith.addf %19, %18 : vector<16x256xf32>
    %21 = tpu.reciprocal %20 {approx = true} : vector<16x256xf32> -> vector<16x256xf32>
    %cst_12 = arith.constant 1.06140542 : f32
    %22 = vector.broadcast %cst_12 : f32 to vector<16x256xf32>
    %23 = arith.mulf %22, %21 : vector<16x256xf32>
    %cst_13 = arith.constant -1.45315206 : f32
    %24 = vector.broadcast %cst_13 : f32 to vector<16x256xf32>
    %25 = arith.addf %23, %24 : vector<16x256xf32>
    %26 = arith.mulf %25, %21 : vector<16x256xf32>
    %cst_14 = arith.constant 1.42141378 : f32
    %27 = vector.broadcast %cst_14 : f32 to vector<16x256xf32>
    %28 = arith.addf %26, %27 : vector<16x256xf32>
    %29 = arith.mulf %28, %21 : vector<16x256xf32>
    %cst_15 = arith.constant -0.284496725 : f32
    %30 = vector.broadcast %cst_15 : f32 to vector<16x256xf32>
    %31 = arith.addf %29, %30 : vector<16x256xf32>
    %32 = arith.mulf %31, %21 : vector<16x256xf32>
    %cst_16 = arith.constant 0.254829586 : f32
    %33 = vector.broadcast %cst_16 : f32 to vector<16x256xf32>
    %34 = arith.addf %32, %33 : vector<16x256xf32>
    %35 = arith.mulf %34, %21 : vector<16x256xf32>
    %cst_17 = arith.constant 0.000000e+00 : f32
    %36 = vector.broadcast %cst_17 : f32 to vector<16x256xf32>
    %37 = arith.subf %36, %16 : vector<16x256xf32>
    %38 = arith.mulf %37, %16 : vector<16x256xf32>
    %39 = math.exp %38 : vector<16x256xf32>
    %40 = arith.mulf %35, %39 : vector<16x256xf32>
    %cst_18 = arith.constant 1.000000e+00 : f32
    %41 = vector.broadcast %cst_18 : f32 to vector<16x256xf32>
    %42 = arith.subf %41, %40 : vector<16x256xf32>
    %43 = arith.mulf %15, %42 : vector<16x256xf32>
    %cst_19 = arith.constant 1.000000e+00 : f32
    %44 = vector.broadcast %cst_19 : f32 to vector<16x256xf32>
    %45 = arith.addf %44, %43 : vector<16x256xf32>
    %46 = arith.mulf %8, %45 : vector<16x256xf32>
    %47 = vector.extract_strided_slice %46 {offsets = [0, 0], sizes = [16, 128], strides = [1, 1]} : vector<16x256xf32> to vector<16x128xf32>
    %cst_20 = arith.constant dense<0.000000e+00> : vector<16xf32>
    %48 = vector.multi_reduction <add>, %47, %cst_20 [1] : vector<16x128xf32> to vector<16xf32>
    %49 = vector.shape_cast %48 : vector<16xf32> to vector<16x1xf32>
    %cst_21 = arith.constant 1.280000e+02 : f32
    %50 = vector.broadcast %cst_21 : f32 to vector<16x1xf32>
    %51 = arith.divf %49, %50 : vector<16x1xf32>
    %52 = vector.broadcast %51 : vector<16x1xf32> to vector<16x128xf32>
    %53 = arith.subf %47, %52 : vector<16x128xf32>
    %54 = vector.broadcast %51 : vector<16x1xf32> to vector<16x128xf32>
    %55 = arith.subf %47, %54 : vector<16x128xf32>
    %56 = arith.mulf %53, %55 : vector<16x128xf32>
    %cst_22 = arith.constant dense<0.000000e+00> : vector<16xf32>
    %57 = vector.multi_reduction <add>, %56, %cst_22 [1] : vector<16x128xf32> to vector<16xf32>
    %58 = vector.shape_cast %57 : vector<16xf32> to vector<16x1xf32>
    %cst_23 = arith.constant 1.280000e+02 : f32
    %59 = vector.broadcast %cst_23 : f32 to vector<16x1xf32>
    %60 = arith.divf %58, %59 : vector<16x1xf32>
    %61 = vector.broadcast %51 : vector<16x1xf32> to vector<16x128xf32>
    %62 = arith.subf %47, %61 : vector<16x128xf32>
    %cst_24 = arith.constant 9.99999996E-13 : f32
    %63 = vector.broadcast %cst_24 : f32 to vector<16x1xf32>
    %64 = arith.addf %60, %63 : vector<16x1xf32>
    %65 = math.rsqrt %64 : vector<16x1xf32>
    %66 = vector.broadcast %65 : vector<16x1xf32> to vector<16x128xf32>
    %67 = arith.mulf %62, %66 : vector<16x128xf32>
    %68 = vector.extract_strided_slice %46 {offsets = [0, 128], sizes = [16, 128], strides = [1, 1]} : vector<16x256xf32> to vector<16x128xf32>
    %cst_25 = arith.constant dense<0.000000e+00> : vector<16xf32>
    %69 = vector.multi_reduction <add>, %68, %cst_25 [1] : vector<16x128xf32> to vector<16xf32>
    %70 = vector.shape_cast %69 : vector<16xf32> to vector<16x1xf32>
    %cst_26 = arith.constant 1.280000e+02 : f32
    %71 = vector.broadcast %cst_26 : f32 to vector<16x1xf32>
    %72 = arith.divf %70, %71 : vector<16x1xf32>
    %73 = vector.broadcast %72 : vector<16x1xf32> to vector<16x128xf32>
    %74 = arith.subf %68, %73 : vector<16x128xf32>
    %75 = vector.broadcast %72 : vector<16x1xf32> to vector<16x128xf32>
    %76 = arith.subf %68, %75 : vector<16x128xf32>
    %77 = arith.mulf %74, %76 : vector<16x128xf32>
    %cst_27 = arith.constant dense<0.000000e+00> : vector<16xf32>
    %78 = vector.multi_reduction <add>, %77, %cst_27 [1] : vector<16x128xf32> to vector<16xf32>
    %79 = vector.shape_cast %78 : vector<16xf32> to vector<16x1xf32>
    %cst_28 = arith.constant 1.280000e+02 : f32
    %80 = vector.broadcast %cst_28 : f32 to vector<16x1xf32>
    %81 = arith.divf %79, %80 : vector<16x1xf32>
    %82 = vector.broadcast %72 : vector<16x1xf32> to vector<16x128xf32>
    %83 = arith.subf %68, %82 : vector<16x128xf32>
    %cst_29 = arith.constant 9.99999996E-13 : f32
    %84 = vector.broadcast %cst_29 : f32 to vector<16x1xf32>
    %85 = arith.addf %81, %84 : vector<16x1xf32>
    %86 = math.rsqrt %85 : vector<16x1xf32>
    %87 = vector.broadcast %86 : vector<16x1xf32> to vector<16x128xf32>
    %88 = arith.mulf %83, %87 : vector<16x128xf32>
    %89 = tpu.concatenate %67, %88 in 1 : vector<16x128xf32>, vector<16x128xf32> -> vector<16x256xf32>
    %c0_30 = arith.constant 0 : index
    %c0_31 = arith.constant 0 : index
    %90 = vector.load %arg5[%c0_30, %c0_31] : memref<1x256xf32, #tpu.memory_space<vmem>>, vector<1x256xf32>
    %91 = vector.broadcast %90 : vector<1x256xf32> to vector<16x256xf32>
    %92 = arith.mulf %91, %89 : vector<16x256xf32>
    %c0_32 = arith.constant 0 : index
    %c0_33 = arith.constant 0 : index
    %93 = vector.load %arg6[%c0_32, %c0_33] : memref<1x256xf32, #tpu.memory_space<vmem>>, vector<1x256xf32>
    %94 = vector.broadcast %93 : vector<1x256xf32> to vector<16x256xf32>
    %95 = arith.addf %92, %94 : vector<16x256xf32>
    %96 = arith.truncf %95 : vector<16x256xf32> to vector<16x256xbf16>
    %c0_34 = arith.constant 0 : index
    %c0_35 = arith.constant 0 : index
    %97 = vector.load %arg7[%c0_34, %c0_35] : memref<256x128xbf16, #tpu.memory_space<vmem>>, vector<256x128xbf16>
    %cst_36 = arith.constant dense<0.000000e+00> : vector<16x128xf32>
    %98 = tpu.matmul %96, %97, %cst_36 {dimension_numbers = #tpu.dot_dimension_numbers<[1], [0], [0], [1], [0, 0, 1, 1], [], []>} : vector<16x256xbf16>, vector<256x128xbf16>, vector<16x128xf32> -> vector<16x128xf32>
    %c0_37 = arith.constant 0 : index
    %c0_38 = arith.constant 0 : index
    %99 = vector.load %arg8[%c0_37, %c0_38] : memref<1x128xf32, #tpu.memory_space<vmem>>, vector<1x128xf32>
    %100 = vector.broadcast %99 : vector<1x128xf32> to vector<16x128xf32>
    %101 = arith.addf %98, %100 : vector<16x128xf32>
    %c0_39 = arith.constant 0 : index
    %c0_40 = arith.constant 0 : index
    %102 = vector.load %arg11[%c0_39, %c0_40] : memref<16x128xf32, #tpu.memory_space<vmem>>, vector<16x128xf32>
    tpu.vector_store %arg11[%c0_39, %c0_40], %101 {strides = array<i32>} : memref<16x128xf32, #tpu.memory_space<vmem>>, vector<16x128xf32>,
    %c0_41 = arith.constant 0 : index
    %c0_42 = arith.constant 0 : index
    %103 = vector.load %arg2[%c0_41, %c0_42] : memref<8x128xf32, #tpu.memory_space<vmem>>, vector<8x128xf32>
    %104 = arith.truncf %103 : vector<8x128xf32> to vector<8x128xbf16>
    %c0_43 = arith.constant 0 : index
    %c0_44 = arith.constant 0 : index
    %105 = vector.load %arg9[%c0_43, %c0_44] : memref<128x128xbf16, #tpu.memory_space<vmem>>, vector<128x128xbf16>
    %cst_45 = arith.constant dense<0.000000e+00> : vector<8x128xf32>
    %106 = tpu.matmul %104, %105, %cst_45 {dimension_numbers = #tpu.dot_dimension_numbers<[1], [0], [0], [1], [0, 0, 1, 1], [], []>} : vector<8x128xbf16>, vector<128x128xbf16>, vector<8x128xf32> -> vector<8x128xf32>
    %c0_46 = arith.constant 0 : index
    %c0_47 = arith.constant 0 : index
    %107 = vector.load %arg10[%c0_46, %c0_47] : memref<1x128xf32, #tpu.memory_space<vmem>>, vector<1x128xf32>
    %108 = vector.broadcast %107 : vector<1x128xf32> to vector<8x128xf32>
    %109 = arith.addf %106, %108 : vector<8x128xf32>
    %c0_48 = arith.constant 0 : index
    %c0_49 = arith.constant 0 : index
    %110 = vector.load %arg12[%c0_48, %c0_49] : memref<8x128xf32, #tpu.memory_space<vmem>>, vector<8x128xf32>
    tpu.vector_store %arg12[%c0_48, %c0_49], %109 {strides = array<i32>} : memref<8x128xf32, #tpu.memory_space<vmem>>, vector<8x128xf32>,
    return
  }
  func.func @transform_0(%arg0: i32) -> (i32, i32) {
    %c0_i32 = arith.constant 0 : i32
    %c0_i32_0 = arith.constant 0 : i32
    return %arg0, %c0_i32 : i32, i32
  }
  func.func @transform_1(%arg0: i32) -> (i32, i32) {
    %c0_i32 = arith.constant 0 : i32
    %c0_i32_0 = arith.constant 0 : i32
    %c0_i32_1 = arith.constant 0 : i32
    return %c0_i32, %c0_i32_0 : i32, i32
  }
  func.func @transform_2(%arg0: i32) -> (i32, i32) {
    %c0_i32 = arith.constant 0 : i32
    %c0_i32_0 = arith.constant 0 : i32
    %c0_i32_1 = arith.constant 0 : i32
    return %c0_i32, %c0_i32_0 : i32, i32
  }
  func.func @transform_3(%arg0: i32) -> (i32, i32) {
    %c0_i32 = arith.constant 0 : i32
    %c0_i32_0 = arith.constant 0 : i32
    %c0_i32_1 = arith.constant 0 : i32
    return %c0_i32, %c0_i32_0 : i32, i32
  }
  func.func @transform_4(%arg0: i32) -> (i32, i32) {
    %c0_i32 = arith.constant 0 : i32
    %c0_i32_0 = arith.constant 0 : i32
    %c0_i32_1 = arith.constant 0 : i32
    return %c0_i32, %c0_i32_0 : i32, i32
  }
  func.func @transform_5(%arg0: i32) -> (i32, i32) {
    %c0_i32 = arith.constant 0 : i32
    %c0_i32_0 = arith.constant 0 : i32
    %c0_i32_1 = arith.constant 0 : i32
    return %c0_i32, %c0_i32_0 : i32, i32
  }
  func.func @transform_6(%arg0: i32) -> (i32, i32) {
    %c0_i32 = arith.constant 0 : i32
    %c0_i32_0 = arith.constant 0 : i32
    %c0_i32_1 = arith.constant 0 : i32
    return %c0_i32, %c0_i32_0 : i32, i32
  }
  func.func @transform_7(%arg0: i32) -> (i32, i32) {
    %c0_i32 = arith.constant 0 : i32
    %c0_i32_0 = arith.constant 0 : i32
    %c0_i32_1 = arith.constant 0 : i32
    return %c0_i32, %c0_i32_0 : i32, i32
  }
  func.func @transform_8(%arg0: i32) -> (i32, i32) {
    %c0_i32 = arith.constant 0 : i32
    %c0_i32_0 = arith.constant 0 : i32
    %c0_i32_1 = arith.constant 0 : i32
    return %c0_i32, %c0_i32_0 : i32, i32
  }
  func.func @transform_9(%arg0: i32) -> (i32, i32) {
    %c0_i32 = arith.constant 0 : i32
    %c0_i32_0 = arith.constant 0 : i32
    %c0_i32_1 = arith.constant 0 : i32
    return %c0_i32, %c0_i32_0 : i32, i32
  }
  func.func @transform_10(%arg0: i32) -> (i32, i32) {
    %c0_i32 = arith.constant 0 : i32
    %c0_i32_0 = arith.constant 0 : i32
    return %arg0, %c0_i32 : i32, i32
  }
  func.func @transform_11(%arg0: i32) -> (i32, i32) {
    %c0_i32 = arith.constant 0 : i32
    %c0_i32_0 = arith.constant 0 : i32
    return %arg0, %c0_i32 : i32, i32
  }
}

</mosaic_0001>

<llo_original>
// kernel: tpu_custom_call.1
$region0: #{tpu_custom_call.1}
  #allocation0 [shape = 'u32[]', space=smem, size = 0x4, offset = 0x4, fixed_abs, tag = 'smem constant byte address 0x4 - core index']
  #allocation1 [shape = 'u32[72,128]{1,0:T(1,128)}', space=vmem, size = 0x9000, scoped, tag = 'internal scratch']
  %s0 = inlined_call_operand.hbm [shape: f32[16,128], index: 0, kind: input, shape index: {}]
  %s1 = inlined_call_operand.hbm [shape: f32[8,128], index: 1, kind: input, shape index: {}]
  %s2 = inlined_call_operand.hbm [shape: bf16[128,256], index: 2, kind: input, shape index: {}]
  %s3 = inlined_call_operand.vmem [shape: f32[1,256], index: 3, kind: input, shape index: {}]
  %s4 = inlined_call_operand.hbm [shape: f32[1,256], index: 4, kind: input, shape index: {}]
  %s5 = inlined_call_operand.vmem [shape: f32[1,256], index: 5, kind: input, shape index: {}]
  %s6 = inlined_call_operand.hbm [shape: bf16[256,128], index: 6, kind: input, shape index: {}]
  %s7 = inlined_call_operand.vmem [shape: f32[1,128], index: 7, kind: input, shape index: {}]
  %s8 = inlined_call_operand.hbm [shape: bf16[128,128], index: 8, kind: input, shape index: {}]
  %s9 = inlined_call_operand.vmem [shape: f32[1,128], index: 9, kind: input, shape index: {}]
  %s10 = inlined_call_operand.hbm [shape: f32[16,128], index: 10, kind: output, shape index: {0}]
  %s11 = inlined_call_operand.hbm [shape: f32[8,128], index: 11, kind: output, shape index: {1}]
  %12 = xla_tuple %s10, %s11
  %s13 = sld [smem:[#allocation0]]
  $region82: #{tpu_custom_call.1} parent=0
    _
  %s15 = ssub.s32 1, %s13
  %s16 = scalar_select 0, %s15, %s13
  $region1: #{tpu_custom_call.1} parent=0
    #allocation2 [shape = 'u8[8192]{0}', space=vmem, size = 0x2000, scoped, tag = 'input window, operand 0, single buffered']
    #allocation3 [shape = 's32[1]{0}', space=sflag, size = 0x4, scoped, tag = 'scoped memory for tpu_custom_call.1']
    #allocation4 [shape = 's32[1]{0}', space=sflag, size = 0x4, scoped, tag = 'scoped memory for tpu_custom_call.1']
    #allocation5 [shape = 'u8[4096]{0}', space=vmem, size = 0x1000, scoped, tag = 'input window, operand 1, single buffered']
    #allocation6 [shape = 's32[1]{0}', space=sflag, size = 0x4, scoped, tag = 'scoped memory for tpu_custom_call.1']
    #allocation7 [shape = 'u8[65536]{0}', space=vmem, size = 0x10000, scoped, tag = 'input window, operand 2, single buffered']
    #allocation8 [shape = 'u8[1024]{0}', space=vmem, size = 0x400, scoped, tag = 'input window, operand 4, single buffered']
    #allocation9 [shape = 's32[1]{0}', space=sflag, size = 0x4, scoped, tag = 'scoped memory for tpu_custom_call.1']
    #allocation10 [shape = 'u8[65536]{0}', space=vmem, size = 0x10000, scoped, tag = 'input window, operand 6, single buffered']
    #allocation11 [shape = 'u8[32768]{0}', space=vmem, size = 0x8000, scoped, tag = 'input window, operand 8, single buffered']
    #allocation12 [shape = 's32[1]{0}', space=sflag, size = 0x4, scoped, tag = 'scoped memory for tpu_custom_call.1']
    #allocation13 [shape = 'u8[8192]{0}', space=vmem, size = 0x2000, scoped, tag = 'output window, operand 0, single buffered']
    #allocation14 [shape = 'u8[4096]{0}', space=vmem, size = 0x1000, scoped, tag = 'output window, operand 1, single buffered']
    #allocation15 [shape = 's32[1]{0}', space=sflag, size = 0x4, scoped, tag = 'scoped memory for tpu_custom_call.1']
    %17 = vsyncpa [#allocation3], 0
    %18 = vsyncpa [#allocation6], 0
    %19 = vsyncpa [#allocation9], 0
    %20 = vsyncpa [#allocation12], 0
    %21 = vsyncpa [#allocation4], 0
    %22 = vsyncpa [#allocation15], 0
    // Predicated region
    $region2: #{tpu_custom_call.1} parent=1 // pred_check
      _
    $region3: #{tpu_custom_call.1} parent=1 // pred_check_branch
      %24 = sbr.rel (0) target = $region5
    $region4: #{tpu_custom_call.1} parent=1 // pred_region
      %26 = vsyncadd [#allocation3], 0
      %s27 = sshll.u32 %s0, 4
      %s28 = int_to_ptr.hbm [resolvable:$true] %s27
      %s29 = sshll.u32 [#allocation2], 4
      %s30 = int_to_ptr.vmem [resolvable:$true] %s29
      %35 = dma.hbm_to_vmem [thread:$0]  %s28, 256, %s30, [#allocation3], 128, 128, 8
    $region5: #{tpu_custom_call.1} parent=1 // pred_fallthru
      _
    // Predicated region
    $region6: #{tpu_custom_call.1} parent=1 // pred_check
      _
    $region7: #{tpu_custom_call.1} parent=1 // pred_check_branch
      %37 = sbr.rel (0) target = $region9
    $region8: #{tpu_custom_call.1} parent=1 // pred_region
      %39 = vsyncadd [#allocation6], 0
      %s41 = sshll.u32 %s1, 4
      %s42 = int_to_ptr.hbm [resolvable:$true] %s41
      %s43 = sshll.u32 [#allocation5], 4
      %s44 = int_to_ptr.vmem [resolvable:$true] %s43
      %46 = dma.hbm_to_vmem [thread:$0]  %s42, 128, %s44, [#allocation6]
    $region9: #{tpu_custom_call.1} parent=1 // pred_fallthru
      _
    // Predicated region
    $region10: #{tpu_custom_call.1} parent=1 // pred_check
      _
    $region11: #{tpu_custom_call.1} parent=1 // pred_check_branch
      %48 = sbr.rel (0) target = $region13
    $region12: #{tpu_custom_call.1} parent=1 // pred_region
      %50 = vsyncadd [#allocation6], 0
      %s51 = sshll.u32 %s2, 4
      %s52 = int_to_ptr.hbm [resolvable:$true] %s51
      %s53 = sshll.u32 [#allocation7], 4
      %s54 = int_to_ptr.vmem [resolvable:$true] %s53
      %59 = dma.hbm_to_vmem [thread:$0]  %s52, 2048, %s54, [#allocation6], 128, 128, 8
    $region13: #{tpu_custom_call.1} parent=1 // pred_fallthru
      _
    // Predicated region
    $region14: #{tpu_custom_call.1} parent=1 // pred_check
      _
    $region15: #{tpu_custom_call.1} parent=1 // pred_check_branch
      %61 = sbr.rel (0) target = $region17
    $region16: #{tpu_custom_call.1} parent=1 // pred_region
      _
    $region17: #{tpu_custom_call.1} parent=1 // pred_fallthru
      _
    // Predicated region
    $region18: #{tpu_custom_call.1} parent=1 // pred_check
      _
    $region19: #{tpu_custom_call.1} parent=1 // pred_check_branch
      %63 = sbr.rel (0) target = $region21
    $region20: #{tpu_custom_call.1} parent=1 // pred_region
      %65 = vsyncadd [#allocation9], 0
      %s67 = sshll.u32 %s4, 4
      %s68 = int_to_ptr.hbm [resolvable:$true] %s67
      %s69 = sshll.u32 [#allocation8], 4
      %s70 = int_to_ptr.vmem [resolvable:$true] %s69
      %72 = dma.hbm_to_vmem [thread:$0]  %s68, 32, %s70, [#allocation9]
    $region21: #{tpu_custom_call.1} parent=1 // pred_fallthru
      _
    // Predicated region
    $region22: #{tpu_custom_call.1} parent=1 // pred_check
      _
    $region23: #{tpu_custom_call.1} parent=1 // pred_check_branch
      %74 = sbr.rel (0) target = $region25
    $region24: #{tpu_custom_call.1} parent=1 // pred_region
      _
    $region25: #{tpu_custom_call.1} parent=1 // pred_fallthru
      _
    // Predicated region
    $region26: #{tpu_custom_call.1} parent=1 // pred_check
      _
    $region27: #{tpu_custom_call.1} parent=1 // pred_check_branch
      %76 = sbr.rel (0) target = $region29
    $region28: #{tpu_custom_call.1} parent=1 // pred_region
      %78 = vsyncadd [#allocation9], 0
      %s79 = sshll.u32 %s6, 4
      %s80 = int_to_ptr.hbm [resolvable:$true] %s79
      %s81 = sshll.u32 [#allocation10], 4
      %s82 = int_to_ptr.vmem [resolvable:$true] %s81
      %87 = dma.hbm_to_vmem [thread:$0]  %s80, 2048, %s82, [#allocation9], 64, 64, 4
    $region29: #{tpu_custom_call.1} parent=1 // pred_fallthru
      _
    // Predicated region
    $region30: #{tpu_custom_call.1} parent=1 // pred_check
      _
    $region31: #{tpu_custom_call.1} parent=1 // pred_check_branch
      %89 = sbr.rel (0) target = $region33
    $region32: #{tpu_custom_call.1} parent=1 // pred_region
      _
    $region33: #{tpu_custom_call.1} parent=1 // pred_fallthru
      _
    // Predicated region
    $region34: #{tpu_custom_call.1} parent=1 // pred_check
      _
    $region35: #{tpu_custom_call.1} parent=1 // pred_check_branch
      %91 = sbr.rel (0) target = $region37
    $region36: #{tpu_custom_call.1} parent=1 // pred_region
      %93 = vsyncadd [#allocation12], 0
      %s94 = sshll.u32 %s8, 4
      %s95 = int_to_ptr.hbm [resolvable:$true] %s94
      %s96 = sshll.u32 [#allocation11], 4
      %s97 = int_to_ptr.vmem [resolvable:$true] %s96
      %102 = dma.hbm_to_vmem [thread:$0]  %s95, 1024, %s97, [#allocation12], 64, 64, 4
    $region37: #{tpu_custom_call.1} parent=1 // pred_fallthru
      _
    // Predicated region
    $region38: #{tpu_custom_call.1} parent=1 // pred_check
      _
    $region39: #{tpu_custom_call.1} parent=1 // pred_check_branch
      %104 = sbr.rel (0) target = $region41
    $region40: #{tpu_custom_call.1} parent=1 // pred_region
      _
    $region41: #{tpu_custom_call.1} parent=1 // pred_fallthru
      _
    // Predicated region
    $region42: #{tpu_custom_call.1} parent=1 // pred_check
      _
    $region43: #{tpu_custom_call.1} parent=1 // pred_check_branch
      %106 = sbr.rel (0) target = $region45
    $region44: #{tpu_custom_call.1} parent=1 // pred_region
      %108 = dma.done [#allocation3], 256
    $region45: #{tpu_custom_call.1} parent=1 // pred_fallthru
      _
    // Predicated region
    $region46: #{tpu_custom_call.1} parent=1 // pred_check
      _
    $region47: #{tpu_custom_call.1} parent=1 // pred_check_branch
      %110 = sbr.rel (0) target = $region49
    $region48: #{tpu_custom_call.1} parent=1 // pred_region
      %112 = dma.done [#allocation6], 128
    $region49: #{tpu_custom_call.1} parent=1 // pred_fallthru
      _
    // Predicated region
    $region50: #{tpu_custom_call.1} parent=1 // pred_check
      _
    $region51: #{tpu_custom_call.1} parent=1 // pred_check_branch
      %114 = sbr.rel (0) target = $region53
    $region52: #{tpu_custom_call.1} parent=1 // pred_region
      %116 = dma.done [#allocation6], 2048
    $region53: #{tpu_custom_call.1} parent=1 // pred_fallthru
      _
    // Predicated region
    $region54: #{tpu_custom_call.1} parent=1 // pred_check
      _
    $region55: #{tpu_custom_call.1} parent=1 // pred_check_branch
      %118 = sbr.rel (0) target = $region57
    $region56: #{tpu_custom_call.1} parent=1 // pred_region
      %120 = dma.done [#allocation9], 32
    $region57: #{tpu_custom_call.1} parent=1 // pred_fallthru
      _
    // Predicated region
    $region58: #{tpu_custom_call.1} parent=1 // pred_check
      _
    $region59: #{tpu_custom_call.1} parent=1 // pred_check_branch
      %122 = sbr.rel (0) target = $region61
    $region60: #{tpu_custom_call.1} parent=1 // pred_region
      %124 = dma.done [#allocation9], 2048
    $region61: #{tpu_custom_call.1} parent=1 // pred_fallthru
      _
    // Predicated region
    $region62: #{tpu_custom_call.1} parent=1 // pred_check
      _
    $region63: #{tpu_custom_call.1} parent=1 // pred_check_branch
      %126 = sbr.rel (0) target = $region65
    $region64: #{tpu_custom_call.1} parent=1 // pred_region
      %128 = dma.done [#allocation12], 1024
    $region65: #{tpu_custom_call.1} parent=1 // pred_fallthru
      _
    %v129 = vld [vmem:[#allocation2] sm:$0xff]
    %v130 = vld [vmem:[#allocation2 + $0x8] sm:$0xff]
    %v131 = vpack.c.bf16 %v130, %v129
    %v132 = vld [vmem:[#allocation7] sm:$0xff]
    %v133 = vld [vmem:[#allocation7 + $0x8] sm:$0xff]
    %v134 = vld [vmem:[#allocation7 + $0x10] sm:$0xff]
    %v135 = vld [vmem:[#allocation7 + $0x18] sm:$0xff]
    %v136 = vld [vmem:[#allocation7 + $0x20] sm:$0xff]
    %v137 = vld [vmem:[#allocation7 + $0x28] sm:$0xff]
    %v138 = vld [vmem:[#allocation7 + $0x30] sm:$0xff]
    %v139 = vld [vmem:[#allocation7 + $0x38] sm:$0xff]
    %v140 = vld [vmem:[#allocation7 + $0x40] sm:$0xff]
    %v141 = vld [vmem:[#allocation7 + $0x48] sm:$0xff]
    %v142 = vld [vmem:[#allocation7 + $0x50] sm:$0xff]
    %v143 = vld [vmem:[#allocation7 + $0x58] sm:$0xff]
    %v144 = vld [vmem:[#allocation7 + $0x60] sm:$0xff]
    %v145 = vld [vmem:[#allocation7 + $0x68] sm:$0xff]
    %v146 = vld [vmem:[#allocation7 + $0x70] sm:$0xff]
    %v147 = vld [vmem:[#allocation7 + $0x78] sm:$0xff]
    %v148 = vld [vmem:[%s3] sm:$0x3]
    %v150 = vperm.slane %v148, 0
    %v151 = vperm.slane %v148, 1
    %v170 = vunpack.c.l.b16 %v132
    %v171 = vunpack.c.h.b16 %v132
    %v172 = vunpack.c.l.b16 %v133
    %v173 = vunpack.c.h.b16 %v133
    %v174 = vunpack.c.l.b16 %v134
    %v175 = vunpack.c.h.b16 %v134
    %v176 = vunpack.c.l.b16 %v135
    %v177 = vunpack.c.h.b16 %v135
    %v178 = vunpack.c.l.b16 %v136
    %v179 = vunpack.c.h.b16 %v136
    %v180 = vunpack.c.l.b16 %v137
    %v181 = vunpack.c.h.b16 %v137
    %v182 = vunpack.c.l.b16 %v138
    %v183 = vunpack.c.h.b16 %v138
    %v184 = vunpack.c.l.b16 %v139
    %v185 = vunpack.c.h.b16 %v139
    %v186 = vunpack.c.l.b16 %v140
    %v187 = vunpack.c.h.b16 %v140
    %v188 = vunpack.c.l.b16 %v141
    %v189 = vunpack.c.h.b16 %v141
    %v190 = vunpack.c.l.b16 %v142
    %v191 = vunpack.c.h.b16 %v142
    %v192 = vunpack.c.l.b16 %v143
    %v193 = vunpack.c.h.b16 %v143
    %v194 = vunpack.c.l.b16 %v144
    %v195 = vunpack.c.h.b16 %v144
    %v196 = vunpack.c.l.b16 %v145
    %v197 = vunpack.c.h.b16 %v145
    %v198 = vunpack.c.l.b16 %v146
    %v199 = vunpack.c.h.b16 %v146
    %v200 = vunpack.c.l.b16 %v147
    %v201 = vunpack.c.h.b16 %v147
    %v202 = vpack.c.b16 %v172, %v170
    %v203 = vpack.c.b16 %v173, %v171
    %v204 = vpack.c.b16 %v176, %v174
    %v205 = vpack.c.b16 %v177, %v175
    %v206 = vpack.c.b16 %v180, %v178
    %v207 = vpack.c.b16 %v181, %v179
    %v208 = vpack.c.b16 %v184, %v182
    %v209 = vpack.c.b16 %v185, %v183
    %v210 = vpack.c.b16 %v188, %v186
    %v211 = vpack.c.b16 %v189, %v187
    %v212 = vpack.c.b16 %v192, %v190
    %v213 = vpack.c.b16 %v193, %v191
    %v214 = vpack.c.b16 %v196, %v194
    %v215 = vpack.c.b16 %v197, %v195
    %v216 = vpack.c.b16 %v200, %v198
    %v217 = vpack.c.b16 %v201, %v199
    %234 = vmatpush.bf16.msra.mxu0 %v216
    %235 = vmatpush.bf16.msra.mxu0 %v214
    %236 = vmatpush.bf16.msra.mxu0 %v212
    %237 = vmatpush.bf16.msra.mxu0 %v210
    %238 = vmatpush.bf16.msra.mxu0 %v208
    %239 = vmatpush.bf16.msra.mxu0 %v206
    %240 = vmatpush.bf16.msra.mxu0 %v204
    %241 = vmatpush.bf16.msra.mxu0 %v202
    %242 = vmatmul.bf16.gmra.mxu0 %v131
    %v243 = vpop.f32.mrf.mxu0
    %v244 = vadd.f32 %v150, %v243
    %v245 = vpop.f32.mrf.mxu0
    %v246 = vadd.f32 %v150, %v245
    %247 = vdwg.mxu0
    %248 = vmatpush.bf16.msra.mxu0 %v217
    %249 = vmatpush.bf16.msra.mxu0 %v215
    %250 = vmatpush.bf16.msra.mxu0 %v213
    %251 = vmatpush.bf16.msra.mxu0 %v211
    %252 = vmatpush.bf16.msra.mxu0 %v209
    %253 = vmatpush.bf16.msra.mxu0 %v207
    %254 = vmatpush.bf16.msra.mxu0 %v205
    %255 = vmatpush.bf16.msra.mxu0 %v203
    %256 = vmatmul.bf16.gmra.mxu0 %v131
    %v257 = vpop.f32.mrf.mxu0
    %v258 = vadd.f32 %v151, %v257
    %v259 = vpop.f32.mrf.mxu0
    %v260 = vadd.f32 %v151, %v259
    %261 = vdwg.mxu0
    %v262 = vmul.f32 %v244, 0.5
    %v263 = vmul.f32 %v258, 0.5
    %v264 = vmul.f32 %v246, 0.5
    %v265 = vmul.f32 %v260, 0.5
    %v266 = vmul.f32 %v244, 0.70710677
    %v267 = vmul.f32 %v258, 0.70710677
    %v268 = vmul.f32 %v246, 0.70710677
    %v269 = vmul.f32 %v260, 0.70710677
    %vm270 = vcmp.ge.f32.partialorder %v266, 0.0
    %vm271 = vcmp.ge.f32.partialorder %v267, 0.0
    %vm272 = vcmp.ge.f32.partialorder %v268, 0.0
    %vm273 = vcmp.ge.f32.partialorder %v269, 0.0
    %v274 = vsel %vm270, 1.0, -1.0
    %v275 = vsel %vm271, 1.0, -1.0
    %v276 = vsel %vm272, 1.0, -1.0
    %v277 = vsel %vm273, 1.0, -1.0
    %v278 = vand.u32 2147483647, %v266
    %v279 = vand.u32 2147483647, %v267
    %v280 = vand.u32 2147483647, %v268
    %v281 = vand.u32 2147483647, %v269
    %v282 = vmul.f32 %v278, 0.3275911
    %v283 = vmul.f32 %v279, 0.3275911
    %v284 = vmul.f32 %v280, 0.3275911
    %v285 = vmul.f32 %v281, 0.3275911
    %v286 = vadd.f32 %v282, 1.0
    %v287 = vadd.f32 %v283, 1.0
    %v288 = vadd.f32 %v284, 1.0
    %v289 = vadd.f32 %v285, 1.0
    %v290 = vrcp.pop %v286
    %v291 = vrcp.pop %v287
    %v292 = vrcp.pop %v288
    %v293 = vrcp.pop %v289
    %v294 = vmul.f32 %v290, 1.0614054
    %v295 = vmul.f32 %v291, 1.0614054
    %v296 = vmul.f32 %v292, 1.0614054
    %v297 = vmul.f32 %v293, 1.0614054
    %v298 = vadd.f32 %v294, -1.4531521
    %v299 = vadd.f32 %v295, -1.4531521
    %v300 = vadd.f32 %v296, -1.4531521
    %v301 = vadd.f32 %v297, -1.4531521
    %v302 = vmul.f32 %v298, %v290
    %v303 = vmul.f32 %v299, %v291
    %v304 = vmul.f32 %v300, %v292
    %v305 = vmul.f32 %v301, %v293
    %v306 = vadd.f32 %v302, 1.4214138
    %v307 = vadd.f32 %v303, 1.4214138
    %v308 = vadd.f32 %v304, 1.4214138
    %v309 = vadd.f32 %v305, 1.4214138
    %v310 = vmul.f32 %v306, %v290
    %v311 = vmul.f32 %v307, %v291
    %v312 = vmul.f32 %v308, %v292
    %v313 = vmul.f32 %v309, %v293
    %v314 = vadd.f32 %v310, -0.28449672
    %v315 = vadd.f32 %v311, -0.28449672
    %v316 = vadd.f32 %v312, -0.28449672
    %v317 = vadd.f32 %v313, -0.28449672
    %v318 = vmul.f32 %v314, %v290
    %v319 = vmul.f32 %v315, %v291
    %v320 = vmul.f32 %v316, %v292
    %v321 = vmul.f32 %v317, %v293
    %v322 = vadd.f32 %v318, 0.2548296
    %v323 = vadd.f32 %v319, 0.2548296
    %v324 = vadd.f32 %v320, 0.2548296
    %v325 = vadd.f32 %v321, 0.2548296
    %v326 = vmul.f32 %v322, %v290
    %v327 = vmul.f32 %v323, %v291
    %v328 = vmul.f32 %v324, %v292
    %v329 = vmul.f32 %v325, %v293
    %v330 = vsub.f32 0.0, %v278
    %v331 = vsub.f32 0.0, %v279
    %v332 = vsub.f32 0.0, %v280
    %v333 = vsub.f32 0.0, %v281
    %v334 = vmul.f32 %v330, %v278
    %v335 = vmul.f32 %v331, %v279
    %v336 = vmul.f32 %v332, %v280
    %v337 = vmul.f32 %v333, %v281
    %v338 = vmul.f32 %v334, 1.442695
    %v339 = vpow.pop %v338
    %v340 = vmul.f32 %v335, 1.442695
    %v341 = vpow.pop %v340
    %v342 = vmul.f32 %v336, 1.442695
    %v343 = vpow.pop %v342
    %v344 = vmul.f32 %v337, 1.442695
    %v345 = vpow.pop %v344
    %v346 = vmul.f32 %v326, %v339
    %v347 = vmul.f32 %v327, %v341
    %v348 = vmul.f32 %v328, %v343
    %v349 = vmul.f32 %v329, %v345
    %v350 = vsub.f32 1.0, %v346
    %v351 = vsub.f32 1.0, %v347
    %v352 = vsub.f32 1.0, %v348
    %v353 = vsub.f32 1.0, %v349
    %v354 = vmul.f32 %v274, %v350
    %v355 = vmul.f32 %v275, %v351
    %v356 = vmul.f32 %v276, %v352
    %v357 = vmul.f32 %v277, %v353
    %v358 = vadd.f32 %v354, 1.0
    %v359 = vadd.f32 %v355, 1.0
    %v360 = vadd.f32 %v356, 1.0
    %v361 = vadd.f32 %v357, 1.0
    %v362 = vmul.f32 %v262, %v358
    %v363 = vmul.f32 %v263, %v359
    %v364 = vmul.f32 %v264, %v360
    %v365 = vmul.f32 %v265, %v361
    %366 = vadd.xlane.f32.xlu0 %v362
    %v367 = vpop.xlane.xlu0 %366
    %368 = vadd.xlane.f32.xlu0 %v364
    %v369 = vpop.xlane.xlu0 %368
    %v370 = vrcp.pop 128.0
    %v371 = vmul.f32 128.0, %v370
    %v372 = vsub.f32 1.0, %v371
    %v373 = vmul.f32 %v370, %v372
    %v374 = vadd.f32 %v370, %v373
    %vm375 = vweird.f32 %v370
    %v376 = vsel %vm375, %v370, %v374
    %v377 = vmul.f32 %v367, %v376
    %v378 = vmul.f32 %v369, %v376
    %v379 = vsub.f32 %v362, %v377
    %v380 = vsub.f32 %v364, %v378
    %v381 = vmul.f32 %v379, %v379
    %v382 = vmul.f32 %v380, %v380
    %383 = vadd.xlane.f32.xlu0 %v381
    %v384 = vpop.xlane.xlu0 %383
    %385 = vadd.xlane.f32.xlu0 %v382
    %v386 = vpop.xlane.xlu0 %385
    %v387 = vmul.f32 %v384, %v376
    %v388 = vmul.f32 %v386, %v376
    %v389 = vadd.f32 %v387, 1e-12
    %v390 = vadd.f32 %v388, 1e-12
    %v391 = vrsqrt.pop %v389
    %v392 = vmul.f32 %v391, %v389
    %v393 = vmul.f32 %v392, %v391
    %v394 = vmul.f32 0.5, %v393
    %v395 = vsub.f32 1.5, %v394
    %v396 = vmul.f32 %v391, %v395
    %vm397 = vweird.f32 %v389
    %vm398 = vweird.f32 %v391
    %vm399 = vmor %vm397, %vm398
    %v400 = vsel %vm399, %v391, %v396
    %v401 = vrsqrt.pop %v390
    %v402 = vmul.f32 %v401, %v390
    %v403 = vmul.f32 %v402, %v401
    %v404 = vmul.f32 0.5, %v403
    %v405 = vsub.f32 1.5, %v404
    %v406 = vmul.f32 %v401, %v405
    %vm407 = vweird.f32 %v390
    %vm408 = vweird.f32 %v401
    %vm409 = vmor %vm407, %vm408
    %v410 = vsel %vm409, %v401, %v406
    %v411 = vmul.f32 %v379, %v400
    %v412 = vmul.f32 %v380, %v410
    %413 = vadd.xlane.f32.xlu0 %v363
    %v414 = vpop.xlane.xlu0 %413
    %415 = vadd.xlane.f32.xlu0 %v365
    %v416 = vpop.xlane.xlu0 %415
    %v417 = vmul.f32 %v414, %v376
    %v418 = vmul.f32 %v416, %v376
    %v419 = vsub.f32 %v363, %v417
    %v420 = vsub.f32 %v365, %v418
    %v421 = vmul.f32 %v419, %v419
    %v422 = vmul.f32 %v420, %v420
    %423 = vadd.xlane.f32.xlu0 %v421
    %v424 = vpop.xlane.xlu0 %423
    %425 = vadd.xlane.f32.xlu0 %v422
    %v426 = vpop.xlane.xlu0 %425
    %v427 = vmul.f32 %v424, %v376
    %v428 = vmul.f32 %v426, %v376
    %v429 = vadd.f32 %v427, 1e-12
    %v430 = vadd.f32 %v428, 1e-12
    %v431 = vrsqrt.pop %v429
    %v432 = vmul.f32 %v431, %v429
    %v433 = vmul.f32 %v432, %v431
    %v434 = vmul.f32 0.5, %v433
    %v435 = vsub.f32 1.5, %v434
    %v436 = vmul.f32 %v431, %v435
    %vm437 = vweird.f32 %v429
    %vm438 = vweird.f32 %v431
    %vm439 = vmor %vm437, %vm438
    %v440 = vsel %vm439, %v431, %v436
    %v441 = vrsqrt.pop %v430
    %v442 = vmul.f32 %v441, %v430
    %v443 = vmul.f32 %v442, %v441
    %v444 = vmul.f32 0.5, %v443
    %v445 = vsub.f32 1.5, %v444
    %v446 = vmul.f32 %v441, %v445
    %vm447 = vweird.f32 %v430
    %vm448 = vweird.f32 %v441
    %vm449 = vmor %vm447, %vm448
    %v450 = vsel %vm449, %v441, %v446
    %v451 = vmul.f32 %v419, %v440
    %v452 = vmul.f32 %v420, %v450
    %v453 = vld [vmem:[#allocation8] sm:$0x3]
    %v455 = vperm.slane %v453, 0
    %v456 = vperm.slane %v453, 1
    %v459 = vmul.f32 %v455, %v411
    %v460 = vmul.f32 %v456, %v451
    %v461 = vmul.f32 %v455, %v412
    %v462 = vmul.f32 %v456, %v452
    %v463 = vld [vmem:[%s5] sm:$0x3]
    %v465 = vperm.slane %v463, 0
    %v466 = vperm.slane %v463, 1
    %v469 = vadd.f32 %v459, %v465
    %v470 = vadd.f32 %v460, %v466
    %v471 = vadd.f32 %v461, %v465
    %v472 = vadd.f32 %v462, %v466
    %v473 = vpack.c.bf16 %v471, %v469
    %v474 = vpack.c.bf16 %v472, %v470
    %v475 = vld [vmem:[#allocation10] sm:$0xf]
    %v476 = vld [vmem:[#allocation10 + $0x4] sm:$0xf]
    %v477 = vld [vmem:[#allocation10 + $0x8] sm:$0xf]
    %v478 = vld [vmem:[#allocation10 + $0xc] sm:$0xf]
    %v479 = vld [vmem:[#allocation10 + $0x10] sm:$0xf]
    %v480 = vld [vmem:[#allocation10 + $0x14] sm:$0xf]
    %v481 = vld [vmem:[#allocation10 + $0x18] sm:$0xf]
    %v482 = vld [vmem:[#allocation10 + $0x1c] sm:$0xf]
    %v483 = vld [vmem:[#allocation10 + $0x20] sm:$0xf]
    %v484 = vld [vmem:[#allocation10 + $0x24] sm:$0xf]
    %v485 = vld [vmem:[#allocation10 + $0x28] sm:$0xf]
    %v486 = vld [vmem:[#allocation10 + $0x2c] sm:$0xf]
    %v487 = vld [vmem:[#allocation10 + $0x30] sm:$0xf]
    %v488 = vld [vmem:[#allocation10 + $0x34] sm:$0xf]
    %v489 = vld [vmem:[#allocation10 + $0x38] sm:$0xf]
    %v490 = vld [vmem:[#allocation10 + $0x3c] sm:$0xf]
    %v491 = vld [vmem:[#allocation10 + $0x40] sm:$0xf]
    %v492 = vld [vmem:[#allocation10 + $0x44] sm:$0xf]
    %v493 = vld [vmem:[#allocation10 + $0x48] sm:$0xf]
    %v494 = vld [vmem:[#allocation10 + $0x4c] sm:$0xf]
    %v495 = vld [vmem:[#allocation10 + $0x50] sm:$0xf]
    %v496 = vld [vmem:[#allocation10 + $0x54] sm:$0xf]
    %v497 = vld [vmem:[#allocation10 + $0x58] sm:$0xf]
    %v498 = vld [vmem:[#allocation10 + $0x5c] sm:$0xf]
    %v499 = vld [vmem:[#allocation10 + $0x60] sm:$0xf]
    %v500 = vld [vmem:[#allocation10 + $0x64] sm:$0xf]
    %v501 = vld [vmem:[#allocation10 + $0x68] sm:$0xf]
    %v502 = vld [vmem:[#allocation10 + $0x6c] sm:$0xf]
    %v503 = vld [vmem:[#allocation10 + $0x70] sm:$0xf]
    %v504 = vld [vmem:[#allocation10 + $0x74] sm:$0xf]
    %v505 = vld [vmem:[#allocation10 + $0x78] sm:$0xf]
    %v506 = vld [vmem:[#allocation10 + $0x7c] sm:$0xf]
    %v507 = vld [vmem:[%s7] sm:$0x1]
    %v509 = vperm.slane %v507, 0
    %v543 = vunpack.c.l.b16 %v475
    %v544 = vunpack.c.l.b16 %v476
    %v545 = vunpack.c.l.b16 %v477
    %v546 = vunpack.c.l.b16 %v478
    %v547 = vunpack.c.l.b16 %v479
    %v548 = vunpack.c.l.b16 %v480
    %v549 = vunpack.c.l.b16 %v481
    %v550 = vunpack.c.l.b16 %v482
    %v551 = vunpack.c.l.b16 %v483
    %v552 = vunpack.c.l.b16 %v484
    %v553 = vunpack.c.l.b16 %v485
    %v554 = vunpack.c.l.b16 %v486
    %v555 = vunpack.c.l.b16 %v487
    %v556 = vunpack.c.l.b16 %v488
    %v557 = vunpack.c.l.b16 %v489
    %v558 = vunpack.c.l.b16 %v490
    %v559 = vunpack.c.l.b16 %v491
    %v560 = vunpack.c.l.b16 %v492
    %v561 = vunpack.c.l.b16 %v493
    %v562 = vunpack.c.l.b16 %v494
    %v563 = vunpack.c.l.b16 %v495
    %v564 = vunpack.c.l.b16 %v496
    %v565 = vunpack.c.l.b16 %v497
    %v566 = vunpack.c.l.b16 %v498
    %v567 = vunpack.c.l.b16 %v499
    %v568 = vunpack.c.l.b16 %v500
    %v569 = vunpack.c.l.b16 %v501
    %v570 = vunpack.c.l.b16 %v502
    %v571 = vunpack.c.l.b16 %v503
    %v572 = vunpack.c.l.b16 %v504
    %v573 = vunpack.c.l.b16 %v505
    %v574 = vunpack.c.l.b16 %v506
    %v575 = vpack.c.b16 %v544, %v543
    %v576 = vpack.c.b16 %v546, %v545
    %v577 = vpack.c.b16 %v548, %v547
    %v578 = vpack.c.b16 %v550, %v549
    %v579 = vpack.c.b16 %v552, %v551
    %v580 = vpack.c.b16 %v554, %v553
    %v581 = vpack.c.b16 %v556, %v555
    %v582 = vpack.c.b16 %v558, %v557
    %v583 = vpack.c.b16 %v560, %v559
    %v584 = vpack.c.b16 %v562, %v561
    %v585 = vpack.c.b16 %v564, %v563
    %v586 = vpack.c.b16 %v566, %v565
    %v587 = vpack.c.b16 %v568, %v567
    %v588 = vpack.c.b16 %v570, %v569
    %v589 = vpack.c.b16 %v572, %v571
    %v590 = vpack.c.b16 %v574, %v573
    %607 = vmatpush.bf16.msra.mxu0 %v582
    %608 = vmatpush.bf16.msra.mxu0 %v581
    %609 = vmatpush.bf16.msra.mxu0 %v580
    %610 = vmatpush.bf16.msra.mxu0 %v579
    %611 = vmatpush.bf16.msra.mxu0 %v578
    %612 = vmatpush.bf16.msra.mxu0 %v577
    %613 = vmatpush.bf16.msra.mxu0 %v576
    %614 = vmatpush.bf16.msra.mxu0 %v575
    %615 = vmatmul.bf16.gmra.mxu0 %v473
    %v616 = vpop.f32.mrf.mxu0
    %v617 = vadd.f32 %v509, %v616
    %v618 = vpop.f32.mrf.mxu0
    %v619 = vadd.f32 %v509, %v618
    %620 = vdwg.mxu0
    %621 = vmatpush.bf16.msra.mxu0 %v590
    %622 = vmatpush.bf16.msra.mxu0 %v589
    %623 = vmatpush.bf16.msra.mxu0 %v588
    %624 = vmatpush.bf16.msra.mxu0 %v587
    %625 = vmatpush.bf16.msra.mxu0 %v586
    %626 = vmatpush.bf16.msra.mxu0 %v585
    %627 = vmatpush.bf16.msra.mxu0 %v584
    %628 = vmatpush.bf16.msra.mxu0 %v583
    %629 = vmatmul.bf16.gmra.mxu0 %v474
    %v630 = vpop.f32.mrf.mxu0
    %v631 = vadd.f32 %v617, %v630
    %v632 = vpop.f32.mrf.mxu0
    %v633 = vadd.f32 %v619, %v632
    %634 = vdwg.mxu0
    %635 = vst [vmem:[#allocation13] sm:$0xff] %v631
    %636 = vst [vmem:[#allocation13 + $0x8] sm:$0xff] %v633
    %v637 = vld [vmem:[#allocation5] sm:$0xff]
    %v638 = vpack.c.bf16 %v637, %v637
    %v639 = vld [vmem:[#allocation11] sm:$0xf]
    %v640 = vld [vmem:[#allocation11 + $0x4] sm:$0xf]
    %v641 = vld [vmem:[#allocation11 + $0x8] sm:$0xf]
    %v642 = vld [vmem:[#allocation11 + $0xc] sm:$0xf]
    %v643 = vld [vmem:[#allocation11 + $0x10] sm:$0xf]
    %v644 = vld [vmem:[#allocation11 + $0x14] sm:$0xf]
    %v645 = vld [vmem:[#allocation11 + $0x18] sm:$0xf]
    %v646 = vld [vmem:[#allocation11 + $0x1c] sm:$0xf]
    %v647 = vld [vmem:[#allocation11 + $0x20] sm:$0xf]
    %v648 = vld [vmem:[#allocation11 + $0x24] sm:$0xf]
    %v649 = vld [vmem:[#allocation11 + $0x28] sm:$0xf]
    %v650 = vld [vmem:[#allocation11 + $0x2c] sm:$0xf]
    %v651 = vld [vmem:[#allocation11 + $0x30] sm:$0xf]
    %v652 = vld [vmem:[#allocation11 + $0x34] sm:$0xf]
    %v653 = vld [vmem:[#allocation11 + $0x38] sm:$0xf]
    %v654 = vld [vmem:[#allocation11 + $0x3c] sm:$0xf]
    %v655 = vld [vmem:[%s9] sm:$0x1]
    %v657 = vperm.slane %v655, 0
    %v675 = vunpack.c.l.b16 %v639
    %v676 = vunpack.c.l.b16 %v640
    %v677 = vunpack.c.l.b16 %v641
    %v678 = vunpack.c.l.b16 %v642
    %v679 = vunpack.c.l.b16 %v643
    %v680 = vunpack.c.l.b16 %v644
    %v681 = vunpack.c.l.b16 %v645
    %v682 = vunpack.c.l.b16 %v646
    %v683 = vunpack.c.l.b16 %v647
    %v684 = vunpack.c.l.b16 %v648
    %v685 = vunpack.c.l.b16 %v649
    %v686 = vunpack.c.l.b16 %v650
    %v687 = vunpack.c.l.b16 %v651
    %v688 = vunpack.c.l.b16 %v652
    %v689 = vunpack.c.l.b16 %v653
    %v690 = vunpack.c.l.b16 %v654
    %v691 = vpack.c.b16 %v676, %v675
    %v692 = vpack.c.b16 %v678, %v677
    %v693 = vpack.c.b16 %v680, %v679
    %v694 = vpack.c.b16 %v682, %v681
    %v695 = vpack.c.b16 %v684, %v683
    %v696 = vpack.c.b16 %v686, %v685
    %v697 = vpack.c.b16 %v688, %v687
    %v698 = vpack.c.b16 %v690, %v689
    %707 = vmatpush.bf16.msra.mxu0 %v698
    %708 = vmatpush.bf16.msra.mxu0 %v697
    %709 = vmatpush.bf16.msra.mxu0 %v696
    %710 = vmatpush.bf16.msra.mxu0 %v695
    %711 = vmatpush.bf16.msra.mxu0 %v694
    %712 = vmatpush.bf16.msra.mxu0 %v693
    %713 = vmatpush.bf16.msra.mxu0 %v692
    %714 = vmatpush.bf16.msra.mxu0 %v691
    %715 = vmatmul.bf16.gmra.mxu0 %v638
    %v716 = vpop.f32.mrf.mxu0
    %v717 = vadd.f32 %v657, %v716
    %v718 = vpop.f32.mrf.mxu0
    %719 = vdwg.mxu0
    %720 = vst [vmem:[#allocation14] sm:$0xff] %v717
    // Predicated region
    $region66: #{tpu_custom_call.1} parent=1 // pred_check
      _
    $region67: #{tpu_custom_call.1} parent=1 // pred_check_branch
      %722 = sbr.rel (0) target = $region69
    $region68: #{tpu_custom_call.1} parent=1 // pred_region
      %724 = vsyncadd [#allocation4], 0
      %s725 = sshll.u32 [#allocation13], 4
      %s726 = int_to_ptr.vmem [resolvable:$true] %s725
      %s727 = sshll.u32 %s10, 4
      %s728 = int_to_ptr.hbm [resolvable:$true] %s727
      %733 = dma.vmem_to_hbm [thread:$0]  %s726, 256, %s728, [#allocation4], 128, 128, 8
    $region69: #{tpu_custom_call.1} parent=1 // pred_fallthru
      _
    // Predicated region
    $region70: #{tpu_custom_call.1} parent=1 // pred_check
      _
    $region71: #{tpu_custom_call.1} parent=1 // pred_check_branch
      %735 = sbr.rel (0) target = $region73
    $region72: #{tpu_custom_call.1} parent=1 // pred_region
      %737 = vsyncadd [#allocation15], 0
      %s739 = sshll.u32 [#allocation14], 4
      %s740 = int_to_ptr.vmem [resolvable:$true] %s739
      %s741 = sshll.u32 %s11, 4
      %s742 = int_to_ptr.hbm [resolvable:$true] %s741
      %744 = dma.vmem_to_hbm [thread:$0]  %s740, 128, %s742, [#allocation15]
    $region73: #{tpu_custom_call.1} parent=1 // pred_fallthru
      _
    // Predicated region
    $region74: #{tpu_custom_call.1} parent=1 // pred_check
      _
    $region75: #{tpu_custom_call.1} parent=1 // pred_check_branch
      %746 = sbr.rel (0) target = $region77
    $region76: #{tpu_custom_call.1} parent=1 // pred_region
      %748 = dma.done [#allocation4], 256
    $region77: #{tpu_custom_call.1} parent=1 // pred_fallthru
      _
    // Predicated region
    $region78: #{tpu_custom_call.1} parent=1 // pred_check
      _
    $region79: #{tpu_custom_call.1} parent=1 // pred_check_branch
      %750 = sbr.rel (0) target = $region81
    $region80: #{tpu_custom_call.1} parent=1 // pred_region
      %752 = dma.done [#allocation15], 128
    $region81: #{tpu_custom_call.1} parent=1 // pred_fallthru
      _
    %753 = vsyncpa [#allocation3], 1
    %754 = vsyncpa [#allocation6], 1
    %755 = vsyncpa [#allocation9], 1
    %756 = vsyncpa [#allocation12], 1
    %757 = vsyncpa [#allocation4], 1
    %758 = vsyncpa [#allocation15], 1

// kernel: tpu_custom_call.1
$region0: #{tpu_custom_call.1}
  #allocation0 [shape = 'u32[]', space=smem, size = 0x4, offset = 0x4, fixed_abs, tag = 'smem constant byte address 0x4 - core index']
  #allocation1 [shape = 'u32[72,128]{1,0:T(1,128)}', space=vmem, size = 0x9000, scoped, tag = 'internal scratch']
  %s0 = inlined_call_operand.hbm [shape: f32[16,128], index: 0, kind: input, shape index: {}]
  %s1 = inlined_call_operand.hbm [shape: f32[8,128], index: 1, kind: input, shape index: {}]
  %s2 = inlined_call_operand.hbm [shape: bf16[128,256], index: 2, kind: input, shape index: {}]
  %s3 = inlined_call_operand.vmem [shape: f32[1,256], index: 3, kind: input, shape index: {}]
  %s4 = inlined_call_operand.hbm [shape: f32[1,256], index: 4, kind: input, shape index: {}]
  %s5 = inlined_call_operand.vmem [shape: f32[1,256], index: 5, kind: input, shape index: {}]
  %s6 = inlined_call_operand.hbm [shape: bf16[256,128], index: 6, kind: input, shape index: {}]
  %s7 = inlined_call_operand.vmem [shape: f32[1,128], index: 7, kind: input, shape index: {}]
  %s8 = inlined_call_operand.hbm [shape: bf16[128,128], index: 8, kind: input, shape index: {}]
  %s9 = inlined_call_operand.vmem [shape: f32[1,128], index: 9, kind: input, shape index: {}]
  %s10 = inlined_call_operand.hbm [shape: f32[16,128], index: 10, kind: output, shape index: {0}]
  %s11 = inlined_call_operand.hbm [shape: f32[8,128], index: 11, kind: output, shape index: {1}]
  %12 = xla_tuple %s10, %s11
  %s13 = sld [smem:[#allocation0]]
  $region82: #{tpu_custom_call.1} parent=0
    _
  %s15 = ssub.s32 1, %s13
  %s16 = scalar_select 0, %s15, %s13
  $region1: #{tpu_custom_call.1} parent=0
    #allocation2 [shape = 'u8[8192]{0}', space=vmem, size = 0x2000, scoped, tag = 'input window, operand 0, single buffered']
    #allocation3 [shape = 's32[1]{0}', space=sflag, size = 0x4, scoped, tag = 'scoped memory for tpu_custom_call.1']
    #allocation4 [shape = 's32[1]{0}', space=sflag, size = 0x4, scoped, tag = 'scoped memory for tpu_custom_call.1']
    #allocation5 [shape = 'u8[4096]{0}', space=vmem, size = 0x1000, scoped, tag = 'input window, operand 1, single buffered']
    #allocation6 [shape = 's32[1]{0}', space=sflag, size = 0x4, scoped, tag = 'scoped memory for tpu_custom_call.1']
    #allocation7 [shape = 'u8[65536]{0}', space=vmem, size = 0x10000, scoped, tag = 'input window, operand 2, single buffered']
    #allocation8 [shape = 'u8[1024]{0}', space=vmem, size = 0x400, scoped, tag = 'input window, operand 4, single buffered']
    #allocation9 [shape = 's32[1]{0}', space=sflag, size = 0x4, scoped, tag = 'scoped memory for tpu_custom_call.1']
    #allocation10 [shape = 'u8[65536]{0}', space=vmem, size = 0x10000, scoped, tag = 'input window, operand 6, single buffered']
    #allocation11 [shape = 'u8[32768]{0}', space=vmem, size = 0x8000, scoped, tag = 'input window, operand 8, single buffered']
    #allocation12 [shape = 's32[1]{0}', space=sflag, size = 0x4, scoped, tag = 'scoped memory for tpu_custom_call.1']
    #allocation13 [shape = 'u8[8192]{0}', space=vmem, size = 0x2000, scoped, tag = 'output window, operand 0, single buffered']
    #allocation14 [shape = 'u8[4096]{0}', space=vmem, size = 0x1000, scoped, tag = 'output window, operand 1, single buffered']
    #allocation15 [shape = 's32[1]{0}', space=sflag, size = 0x4, scoped, tag = 'scoped memory for tpu_custom_call.1']
    %17 = vsyncpa [#allocation3], 0
    %18 = vsyncpa [#allocation6], 0
    %19 = vsyncpa [#allocation9], 0
    %20 = vsyncpa [#allocation12], 0
    %21 = vsyncpa [#allocation4], 0
    %22 = vsyncpa [#allocation15], 0
    // Predicated region
    $region2: #{tpu_custom_call.1} parent=1 // pred_check
      _
    $region3: #{tpu_custom_call.1} parent=1 // pred_check_branch
      %24 = sbr.rel (0) target = $region5
    $region4: #{tpu_custom_call.1} parent=1 // pred_region
      %26 = vsyncadd [#allocation3], 0
      %s27 = sshll.u32 %s0, 4
      %s28 = int_to_ptr.hbm [resolvable:$true] %s27
      %s29 = sshll.u32 [#allocation2], 4
      %s30 = int_to_ptr.vmem [resolvable:$true] %s29
      %35 = dma.hbm_to_vmem [thread:$0]  %s28, 256, %s30, [#allocation3], 128, 128, 8
    $region5: #{tpu_custom_call.1} parent=1 // pred_fallthru
      _
    // Predicated region
    $region6: #{tpu_custom_call.1} parent=1 // pred_check
      _
    $region7: #{tpu_custom_call.1} parent=1 // pred_check_branch
      %37 = sbr.rel (0) target = $region9
    $region8: #{tpu_custom_call.1} parent=1 // pred_region
      %39 = vsyncadd [#allocation6], 0
      %s41 = sshll.u32 %s1, 4
      %s42 = int_to_ptr.hbm [resolvable:$true] %s41
      %s43 = sshll.u32 [#allocation5], 4
      %s44 = int_to_ptr.vmem [resolvable:$true] %s43
      %46 = dma.hbm_to_vmem [thread:$0]  %s42, 128, %s44, [#allocation6]
    $region9: #{tpu_custom_call.1} parent=1 // pred_fallthru
      _
    // Predicated region
    $region10: #{tpu_custom_call.1} parent=1 // pred_check
      _
    $region11: #{tpu_custom_call.1} parent=1 // pred_check_branch
      %48 = sbr.rel (0) target = $region13
    $region12: #{tpu_custom_call.1} parent=1 // pred_region
      %50 = vsyncadd [#allocation6], 0
      %s51 = sshll.u32 %s2, 4
      %s52 = int_to_ptr.hbm [resolvable:$true] %s51
      %s53 = sshll.u32 [#allocation7], 4
      %s54 = int_to_ptr.vmem [resolvable:$true] %s53
      %59 = dma.hbm_to_vmem [thread:$0]  %s52, 2048, %s54, [#allocation6], 128, 128, 8
    $region13: #{tpu_custom_call.1} parent=1 // pred_fallthru
      _
    // Predicated region
    $region14: #{tpu_custom_call.1} parent=1 // pred_check
      _
    $region15: #{tpu_custom_call.1} parent=1 // pred_check_branch
      %61 = sbr.rel (0) target = $region17
    $region16: #{tpu_custom_call.1} parent=1 // pred_region
      _
    $region17: #{tpu_custom_call.1} parent=1 // pred_fallthru
      _
    // Predicated region
    $region18: #{tpu_custom_call.1} parent=1 // pred_check
      _
    $region19: #{tpu_custom_call.1} parent=1 // pred_check_branch
      %63 = sbr.rel (0) target = $region21
    $region20: #{tpu_custom_call.1} parent=1 // pred_region
      %65 = vsyncadd [#allocation9], 0
      %s67 = sshll.u32 %s4, 4
      %s68 = int_to_ptr.hbm [resolvable:$true] %s67
      %s69 = sshll.u32 [#allocation8], 4
      %s70 = int_to_ptr.vmem [resolvable:$true] %s69
      %72 = dma.hbm_to_vmem [thread:$0]  %s68, 32, %s70, [#allocation9]
    $region21: #{tpu_custom_call.1} parent=1 // pred_fallthru
      _
    // Predicated region
    $region22: #{tpu_custom_call.1} parent=1 // pred_check
      _
    $region23: #{tpu_custom_call.1} parent=1 // pred_check_branch
      %74 = sbr.rel (0) target = $region25
    $region24: #{tpu_custom_call.1} parent=1 // pred_region
      _
    $region25: #{tpu_custom_call.1} parent=1 // pred_fallthru
      _
    // Predicated region
    $region26: #{tpu_custom_call.1} parent=1 // pred_check
      _
    $region27: #{tpu_custom_call.1} parent=1 // pred_check_branch
      %76 = sbr.rel (0) target = $region29
    $region28: #{tpu_custom_call.1} parent=1 // pred_region
      %78 = vsyncadd [#allocation9], 0
      %s79 = sshll.u32 %s6, 4
      %s80 = int_to_ptr.hbm [resolvable:$true] %s79
      %s81 = sshll.u32 [#allocation10], 4
      %s82 = int_to_ptr.vmem [resolvable:$true] %s81
      %87 = dma.hbm_to_vmem [thread:$0]  %s80, 2048, %s82, [#allocation9], 64, 64, 4
    $region29: #{tpu_custom_call.1} parent=1 // pred_fallthru
      _
    // Predicated region
    $region30: #{tpu_custom_call.1} parent=1 // pred_check
      _
    $region31: #{tpu_custom_call.1} parent=1 // pred_check_branch
      %89 = sbr.rel (0) target = $region33
    $region32: #{tpu_custom_call.1} parent=1 // pred_region
      _
    $region33: #{tpu_custom_call.1} parent=1 // pred_fallthru
      _
    // Predicated region
    $region34: #{tpu_custom_call.1} parent=1 // pred_check
      _
    $region35: #{tpu_custom_call.1} parent=1 // pred_check_branch
      %91 = sbr.rel (0) target = $region37
    $region36: #{tpu_custom_call.1} parent=1 // pred_region
      %93 = vsyncadd [#allocation12], 0
      %s94 = sshll.u32 %s8, 4
      %s95 = int_to_ptr.hbm [resolvable:$true] %s94
      %s96 = sshll.u32 [#allocation11], 4
      %s97 = int_to_ptr.vmem [resolvable:$true] %s96
      %102 = dma.hbm_to_vmem [thread:$0]  %s95, 1024, %s97, [#allocation12], 64, 64, 4
    $region37: #{tpu_custom_call.1} parent=1 // pred_fallthru
      _
    // Predicated region
    $region38: #{tpu_custom_call.1} parent=1 // pred_check
      _
    $region39: #{tpu_custom_call.1} parent=1 // pred_check_branch
      %104 = sbr.rel (0) target = $region41
    $region40: #{tpu_custom_call.1} parent=1 // pred_region
      _
    $region41: #{tpu_custom_call.1} parent=1 // pred_fallthru
      _
    // Predicated region
    $region42: #{tpu_custom_call.1} parent=1 // pred_check
      _
    $region43: #{tpu_custom_call.1} parent=1 // pred_check_branch
      %106 = sbr.rel (0) target = $region45
    $region44: #{tpu_custom_call.1} parent=1 // pred_region
      %108 = dma.done [#allocation3], 256
    $region45: #{tpu_custom_call.1} parent=1 // pred_fallthru
      _
    // Predicated region
    $region46: #{tpu_custom_call.1} parent=1 // pred_check
      _
    $region47: #{tpu_custom_call.1} parent=1 // pred_check_branch
      %110 = sbr.rel (0) target = $region49
    $region48: #{tpu_custom_call.1} parent=1 // pred_region
      %112 = dma.done [#allocation6], 128
    $region49: #{tpu_custom_call.1} parent=1 // pred_fallthru
      _
    // Predicated region
    $region50: #{tpu_custom_call.1} parent=1 // pred_check
      _
    $region51: #{tpu_custom_call.1} parent=1 // pred_check_branch
      %114 = sbr.rel (0) target = $region53
    $region52: #{tpu_custom_call.1} parent=1 // pred_region
      %116 = dma.done [#allocation6], 2048
    $region53: #{tpu_custom_call.1} parent=1 // pred_fallthru
      _
    // Predicated region
    $region54: #{tpu_custom_call.1} parent=1 // pred_check
      _
    $region55: #{tpu_custom_call.1} parent=1 // pred_check_branch
      %118 = sbr.rel (0) target = $region57
    $region56: #{tpu_custom_call.1} parent=1 // pred_region
      %120 = dma.done [#allocation9], 32
    $region57: #{tpu_custom_call.1} parent=1 // pred_fallthru
      _
    // Predicated region
    $region58: #{tpu_custom_call.1} parent=1 // pred_check
      _
    $region59: #{tpu_custom_call.1} parent=1 // pred_check_branch
      %122 = sbr.rel (0) target = $region61
    $region60: #{tpu_custom_call.1} parent=1 // pred_region
      %124 = dma.done [#allocation9], 2048
    $region61: #{tpu_custom_call.1} parent=1 // pred_fallthru
      _
    // Predicated region
    $region62: #{tpu_custom_call.1} parent=1 // pred_check
      _
    $region63: #{tpu_custom_call.1} parent=1 // pred_check_branch
      %126 = sbr.rel (0) target = $region65
    $region64: #{tpu_custom_call.1} parent=1 // pred_region
      %128 = dma.done [#allocation12], 1024
    $region65: #{tpu_custom_call.1} parent=1 // pred_fallthru
      _
    %v129 = vld [vmem:[#allocation2] sm:$0xff]
    %v130 = vld [vmem:[#allocation2 + $0x8] sm:$0xff]
    %v131 = vpack.c.bf16 %v130, %v129
    %v132 = vld [vmem:[#allocation7] sm:$0xff]
    %v133 = vld [vmem:[#allocation7 + $0x8] sm:$0xff]
    %v134 = vld [vmem:[#allocation7 + $0x10] sm:$0xff]
    %v135 = vld [vmem:[#allocation7 + $0x18] sm:$0xff]
    %v136 = vld [vmem:[#allocation7 + $0x20] sm:$0xff]
    %v137 = vld [vmem:[#allocation7 + $0x28] sm:$0xff]
    %v138 = vld [vmem:[#allocation7 + $0x30] sm:$0xff]
    %v139 = vld [vmem:[#allocation7 + $0x38] sm:$0xff]
    %v140 = vld [vmem:[#allocation7 + $0x40] sm:$0xff]
    %v141 = vld [vmem:[#allocation7 + $0x48] sm:$0xff]
    %v142 = vld [vmem:[#allocation7 + $0x50] sm:$0xff]
    %v143 = vld [vmem:[#allocation7 + $0x58] sm:$0xff]
    %v144 = vld [vmem:[#allocation7 + $0x60] sm:$0xff]
    %v145 = vld [vmem:[#allocation7 + $0x68] sm:$0xff]
    %v146 = vld [vmem:[#allocation7 + $0x70] sm:$0xff]
    %v147 = vld [vmem:[#allocation7 + $0x78] sm:$0xff]
    %v148 = vld [vmem:[%s3] sm:$0x3]
    %v150 = vperm.slane %v148, 0
    %v151 = vperm.slane %v148, 1
    %v170 = vunpack.c.l.b16 %v132
    %v171 = vunpack.c.h.b16 %v132
    %v172 = vunpack.c.l.b16 %v133
    %v173 = vunpack.c.h.b16 %v133
    %v174 = vunpack.c.l.b16 %v134
    %v175 = vunpack.c.h.b16 %v134
    %v176 = vunpack.c.l.b16 %v135
    %v177 = vunpack.c.h.b16 %v135
    %v178 = vunpack.c.l.b16 %v136
    %v179 = vunpack.c.h.b16 %v136
    %v180 = vunpack.c.l.b16 %v137
    %v181 = vunpack.c.h.b16 %v137
    %v182 = vunpack.c.l.b16 %v138
    %v183 = vunpack.c.h.b16 %v138
    %v184 = vunpack.c.l.b16 %v139
    %v185 = vunpack.c.h.b16 %v139
    %v186 = vunpack.c.l.b16 %v140
    %v187 = vunpack.c.h.b16 %v140
    %v188 = vunpack.c.l.b16 %v141
    %v189 = vunpack.c.h.b16 %v141
    %v190 = vunpack.c.l.b16 %v142
    %v191 = vunpack.c.h.b16 %v142
    %v192 = vunpack.c.l.b16 %v143
    %v193 = vunpack.c.h.b16 %v143
    %v194 = vunpack.c.l.b16 %v144
    %v195 = vunpack.c.h.b16 %v144
    %v196 = vunpack.c.l.b16 %v145
    %v197 = vunpack.c.h.b16 %v145
    %v198 = vunpack.c.l.b16 %v146
    %v199 = vunpack.c.h.b16 %v146
    %v200 = vunpack.c.l.b16 %v147
    %v201 = vunpack.c.h.b16 %v147
    %v202 = vpack.c.b16 %v172, %v170
    %v203 = vpack.c.b16 %v173, %v171
    %v204 = vpack.c.b16 %v176, %v174
    %v205 = vpack.c.b16 %v177, %v175
    %v206 = vpack.c.b16 %v180, %v178
    %v207 = vpack.c.b16 %v181, %v179
    %v208 = vpack.c.b16 %v184, %v182
    %v209 = vpack.c.b16 %v185, %v183
    %v210 = vpack.c.b16 %v188, %v186
    %v211 = vpack.c.b16 %v189, %v187
    %v212 = vpack.c.b16 %v192, %v190
    %v213 = vpack.c.b16 %v193, %v191
    %v214 = vpack.c.b16 %v196, %v194
    %v215 = vpack.c.b16 %v197, %v195
    %v216 = vpack.c.b16 %v200, %v198
    %v217 = vpack.c.b16 %v201, %v199
    %234 = vmatpush.bf16.msra.mxu0 %v216
    %235 = vmatpush.bf16.msra.mxu0 %v214
    %236 = vmatpush.bf16.msra.mxu0 %v212
    %237 = vmatpush.bf16.msra.mxu0 %v210
    %238 = vmatpush.bf16.msra.mxu0 %v208
    %239 = vmatpush.bf16.msra.mxu0 %v206
    %240 = vmatpush.bf16.msra.mxu0 %v204
    %241 = vmatpush.bf16.msra.mxu0 %v202
    %242 = vmatmul.bf16.gmra.mxu0 %v131
    %v243 = vpop.f32.mrf.mxu0
    %v244 = vadd.f32 %v150, %v243
    %v245 = vpop.f32.mrf.mxu0
    %v246 = vadd.f32 %v150, %v245
    %247 = vdwg.mxu0
    %248 = vmatpush.bf16.msra.mxu0 %v217
    %249 = vmatpush.bf16.msra.mxu0 %v215
    %250 = vmatpush.bf16.msra.mxu0 %v213
    %251 = vmatpush.bf16.msra.mxu0 %v211
    %252 = vmatpush.bf16.msra.mxu0 %v209
    %253 = vmatpush.bf16.msra.mxu0 %v207
    %254 = vmatpush.bf16.msra.mxu0 %v205
    %255 = vmatpush.bf16.msra.mxu0 %v203
    %256 = vmatmul.bf16.gmra.mxu0 %v131
    %v257 = vpop.f32.mrf.mxu0
    %v258 = vadd.f32 %v151, %v257
    %v259 = vpop.f32.mrf.mxu0
    %v260 = vadd.f32 %v151, %v259
    %261 = vdwg.mxu0
    %v262 = vmul.f32 %v244, 0.5
    %v263 = vmul.f32 %v258, 0.5
    %v264 = vmul.f32 %v246, 0.5
    %v265 = vmul.f32 %v260, 0.5
    %v266 = vmul.f32 %v244, 0.70710677
    %v267 = vmul.f32 %v258, 0.70710677
    %v268 = vmul.f32 %v246, 0.70710677
    %v269 = vmul.f32 %v260, 0.70710677
    %vm270 = vcmp.ge.f32.partialorder %v266, 0.0
    %vm271 = vcmp.ge.f32.partialorder %v267, 0.0
    %vm272 = vcmp.ge.f32.partialorder %v268, 0.0
    %vm273 = vcmp.ge.f32.partialorder %v269, 0.0
    %v274 = vsel %vm270, 1.0, -1.0
    %v275 = vsel %vm271, 1.0, -1.0
    %v276 = vsel %vm272, 1.0, -1.0
    %v277 = vsel %vm273, 1.0, -1.0
    %v278 = vand.u32 2147483647, %v266
    %v279 = vand.u32 2147483647, %v267
    %v280 = vand.u32 2147483647, %v268
    %v281 = vand.u32 2147483647, %v269
    %v282 = vmul.f32 %v278, 0.3275911
    %v283 = vmul.f32 %v279, 0.3275911
    %v284 = vmul.f32 %v280, 0.3275911
    %v285 = vmul.f32 %v281, 0.3275911
    %v286 = vadd.f32 %v282, 1.0
    %v287 = vadd.f32 %v283, 1.0
    %v288 = vadd.f32 %v284, 1.0
    %v289 = vadd.f32 %v285, 1.0
    %v290 = vrcp.pop %v286
    %v291 = vrcp.pop %v287
    %v292 = vrcp.pop %v288
    %v293 = vrcp.pop %v289
    %v294 = vmul.f32 %v290, 1.0614054
    %v295 = vmul.f32 %v291, 1.0614054
    %v296 = vmul.f32 %v292, 1.0614054
    %v297 = vmul.f32 %v293, 1.0614054
    %v298 = vadd.f32 %v294, -1.4531521
    %v299 = vadd.f32 %v295, -1.4531521
    %v300 = vadd.f32 %v296, -1.4531521
    %v301 = vadd.f32 %v297, -1.4531521
    %v302 = vmul.f32 %v298, %v290
    %v303 = vmul.f32 %v299, %v291
    %v304 = vmul.f32 %v300, %v292
    %v305 = vmul.f32 %v301, %v293
    %v306 = vadd.f32 %v302, 1.4214138
    %v307 = vadd.f32 %v303, 1.4214138
    %v308 = vadd.f32 %v304, 1.4214138
    %v309 = vadd.f32 %v305, 1.4214138
    %v310 = vmul.f32 %v306, %v290
    %v311 = vmul.f32 %v307, %v291
    %v312 = vmul.f32 %v308, %v292
    %v313 = vmul.f32 %v309, %v293
    %v314 = vadd.f32 %v310, -0.28449672
    %v315 = vadd.f32 %v311, -0.28449672
    %v316 = vadd.f32 %v312, -0.28449672
    %v317 = vadd.f32 %v313, -0.28449672
    %v318 = vmul.f32 %v314, %v290
    %v319 = vmul.f32 %v315, %v291
    %v320 = vmul.f32 %v316, %v292
    %v321 = vmul.f32 %v317, %v293
    %v322 = vadd.f32 %v318, 0.2548296
    %v323 = vadd.f32 %v319, 0.2548296
    %v324 = vadd.f32 %v320, 0.2548296
    %v325 = vadd.f32 %v321, 0.2548296
    %v326 = vmul.f32 %v322, %v290
    %v327 = vmul.f32 %v323, %v291
    %v328 = vmul.f32 %v324, %v292
    %v329 = vmul.f32 %v325, %v293
    %v330 = vsub.f32 0.0, %v278
    %v331 = vsub.f32 0.0, %v279
    %v332 = vsub.f32 0.0, %v280
    %v333 = vsub.f32 0.0, %v281
    %v334 = vmul.f32 %v330, %v278
    %v335 = vmul.f32 %v331, %v279
    %v336 = vmul.f32 %v332, %v280
    %v337 = vmul.f32 %v333, %v281
    %v338 = vmul.f32 %v334, 1.442695
    %v339 = vpow.pop %v338
    %v340 = vmul.f32 %v335, 1.442695
    %v341 = vpow.pop %v340
    %v342 = vmul.f32 %v336, 1.442695
    %v343 = vpow.pop %v342
    %v344 = vmul.f32 %v337, 1.442695
    %v345 = vpow.pop %v344
    %v346 = vmul.f32 %v326, %v339
    %v347 = vmul.f32 %v327, %v341
    %v348 = vmul.f32 %v328, %v343
    %v349 = vmul.f32 %v329, %v345
    %v350 = vsub.f32 1.0, %v346
    %v351 = vsub.f32 1.0, %v347
    %v352 = vsub.f32 1.0, %v348
    %v353 = vsub.f32 1.0, %v349
    %v354 = vmul.f32 %v274, %v350
    %v355 = vmul.f32 %v275, %v351
    %v356 = vmul.f32 %v276, %v352
    %v357 = vmul.f32 %v277, %v353
    %v358 = vadd.f32 %v354, 1.0
    %v359 = vadd.f32 %v355, 1.0
    %v360 = vadd.f32 %v356, 1.0
    %v361 = vadd.f32 %v357, 1.0
    %v362 = vmul.f32 %v262, %v358
    %v363 = vmul.f32 %v263, %v359
    %v364 = vmul.f32 %v264, %v360
    %v365 = vmul.f32 %v265, %v361
    %366 = vadd.xlane.f32.xlu0 %v362
    %v367 = vpop.xlane.xlu0 %366
    %368 = vadd.xlane.f32.xlu0 %v364
    %v369 = vpop.xlane.xlu0 %368
    %v370 = vrcp.pop 128.0
    %v371 = vmul.f32 128.0, %v370
    %v372 = vsub.f32 1.0, %v371
    %v373 = vmul.f32 %v370, %v372
    %v374 = vadd.f32 %v370, %v373
    %vm375 = vweird.f32 %v370
    %v376 = vsel %vm375, %v370, %v374
    %v377 = vmul.f32 %v367, %v376
    %v378 = vmul.f32 %v369, %v376
    %v379 = vsub.f32 %v362, %v377
    %v380 = vsub.f32 %v364, %v378
    %v381 = vmul.f32 %v379, %v379
    %v382 = vmul.f32 %v380, %v380
    %383 = vadd.xlane.f32.xlu0 %v381
    %v384 = vpop.xlane.xlu0 %383
    %385 = vadd.xlane.f32.xlu0 %v382
    %v386 = vpop.xlane.xlu0 %385
    %v387 = vmul.f32 %v384, %v376
    %v388 = vmul.f32 %v386, %v376
    %v389 = vadd.f32 %v387, 1e-12
    %v390 = vadd.f32 %v388, 1e-12
    %v391 = vrsqrt.pop %v389
    %v392 = vmul.f32 %v391, %v389
    %v393 = vmul.f32 %v392, %v391
    %v394 = vmul.f32 0.5, %v393
    %v395 = vsub.f32 1.5, %v394
    %v396 = vmul.f32 %v391, %v395
    %vm397 = vweird.f32 %v389
    %vm398 = vweird.f32 %v391
    %vm399 = vmor %vm397, %vm398
    %v400 = vsel %vm399, %v391, %v396
    %v401 = vrsqrt.pop %v390
    %v402 = vmul.f32 %v401, %v390
    %v403 = vmul.f32 %v402, %v401
    %v404 = vmul.f32 0.5, %v403
    %v405 = vsub.f32 1.5, %v404
    %v406 = vmul.f32 %v401, %v405
    %vm407 = vweird.f32 %v390
    %vm408 = vweird.f32 %v401
    %vm409 = vmor %vm407, %vm408
    %v410 = vsel %vm409, %v401, %v406
    %v411 = vmul.f32 %v379, %v400
    %v412 = vmul.f32 %v380, %v410
    %413 = vadd.xlane.f32.xlu0 %v363
    %v414 = vpop.xlane.xlu0 %413
    %415 = vadd.xlane.f32.xlu0 %v365
    %v416 = vpop.xlane.xlu0 %415
    %v417 = vmul.f32 %v414, %v376
    %v418 = vmul.f32 %v416, %v376
    %v419 = vsub.f32 %v363, %v417
    %v420 = vsub.f32 %v365, %v418
    %v421 = vmul.f32 %v419, %v419
    %v422 = vmul.f32 %v420, %v420
    %423 = vadd.xlane.f32.xlu0 %v421
    %v424 = vpop.xlane.xlu0 %423
    %425 = vadd.xlane.f32.xlu0 %v422
    %v426 = vpop.xlane.xlu0 %425
    %v427 = vmul.f32 %v424, %v376
    %v428 = vmul.f32 %v426, %v376
    %v429 = vadd.f32 %v427, 1e-12
    %v430 = vadd.f32 %v428, 1e-12
    %v431 = vrsqrt.pop %v429
    %v432 = vmul.f32 %v431, %v429
    %v433 = vmul.f32 %v432, %v431
    %v434 = vmul.f32 0.5, %v433
    %v435 = vsub.f32 1.5, %v434
    %v436 = vmul.f32 %v431, %v435
    %vm437 = vweird.f32 %v429
    %vm438 = vweird.f32 %v431
    %vm439 = vmor %vm437, %vm438
    %v440 = vsel %vm439, %v431, %v436
    %v441 = vrsqrt.pop %v430
    %v442 = vmul.f32 %v441, %v430
    %v443 = vmul.f32 %v442, %v441
    %v444 = vmul.f32 0.5, %v443
    %v445 = vsub.f32 1.5, %v444
    %v446 = vmul.f32 %v441, %v445
    %vm447 = vweird.f32 %v430
    %vm448 = vweird.f32 %v441
    %vm449 = vmor %vm447, %vm448
    %v450 = vsel %vm449, %v441, %v446
    %v451 = vmul.f32 %v419, %v440
    %v452 = vmul.f32 %v420, %v450
    %v453 = vld [vmem:[#allocation8] sm:$0x3]
    %v455 = vperm.slane %v453, 0
    %v456 = vperm.slane %v453, 1
    %v459 = vmul.f32 %v455, %v411
    %v460 = vmul.f32 %v456, %v451
    %v461 = vmul.f32 %v455, %v412
    %v462 = vmul.f32 %v456, %v452
    %v463 = vld [vmem:[%s5] sm:$0x3]
    %v465 = vperm.slane %v463, 0
    %v466 = vperm.slane %v463, 1
    %v469 = vadd.f32 %v459, %v465
    %v470 = vadd.f32 %v460, %v466
    %v471 = vadd.f32 %v461, %v465
    %v472 = vadd.f32 %v462, %v466
    %v473 = vpack.c.bf16 %v471, %v469
    %v474 = vpack.c.bf16 %v472, %v470
    %v475 = vld [vmem:[#allocation10] sm:$0xf]
    %v476 = vld [vmem:[#allocation10 + $0x4] sm:$0xf]
    %v477 = vld [vmem:[#allocation10 + $0x8] sm:$0xf]
    %v478 = vld [vmem:[#allocation10 + $0xc] sm:$0xf]
    %v479 = vld [vmem:[#allocation10 + $0x10] sm:$0xf]
    %v480 = vld [vmem:[#allocation10 + $0x14] sm:$0xf]
    %v481 = vld [vmem:[#allocation10 + $0x18] sm:$0xf]
    %v482 = vld [vmem:[#allocation10 + $0x1c] sm:$0xf]
    %v483 = vld [vmem:[#allocation10 + $0x20] sm:$0xf]
    %v484 = vld [vmem:[#allocation10 + $0x24] sm:$0xf]
    %v485 = vld [vmem:[#allocation10 + $0x28] sm:$0xf]
    %v486 = vld [vmem:[#allocation10 + $0x2c] sm:$0xf]
    %v487 = vld [vmem:[#allocation10 + $0x30] sm:$0xf]
    %v488 = vld [vmem:[#allocation10 + $0x34] sm:$0xf]
    %v489 = vld [vmem:[#allocation10 + $0x38] sm:$0xf]
    %v490 = vld [vmem:[#allocation10 + $0x3c] sm:$0xf]
    %v491 = vld [vmem:[#allocation10 + $0x40] sm:$0xf]
    %v492 = vld [vmem:[#allocation10 + $0x44] sm:$0xf]
    %v493 = vld [vmem:[#allocation10 + $0x48] sm:$0xf]
    %v494 = vld [vmem:[#allocation10 + $0x4c] sm:$0xf]
    %v495 = vld [vmem:[#allocation10 + $0x50] sm:$0xf]
    %v496 = vld [vmem:[#allocation10 + $0x54] sm:$0xf]
    %v497 = vld [vmem:[#allocation10 + $0x58] sm:$0xf]
    %v498 = vld [vmem:[#allocation10 + $0x5c] sm:$0xf]
    %v499 = vld [vmem:[#allocation10 + $0x60] sm:$0xf]
    %v500 = vld [vmem:[#allocation10 + $0x64] sm:$0xf]
    %v501 = vld [vmem:[#allocation10 + $0x68] sm:$0xf]
    %v502 = vld [vmem:[#allocation10 + $0x6c] sm:$0xf]
    %v503 = vld [vmem:[#allocation10 + $0x70] sm:$0xf]
    %v504 = vld [vmem:[#allocation10 + $0x74] sm:$0xf]
    %v505 = vld [vmem:[#allocation10 + $0x78] sm:$0xf]
    %v506 = vld [vmem:[#allocation10 + $0x7c] sm:$0xf]
    %v507 = vld [vmem:[%s7] sm:$0x1]
    %v509 = vperm.slane %v507, 0
    %v543 = vunpack.c.l.b16 %v475
    %v544 = vunpack.c.l.b16 %v476
    %v545 = vunpack.c.l.b16 %v477
    %v546 = vunpack.c.l.b16 %v478
    %v547 = vunpack.c.l.b16 %v479
    %v548 = vunpack.c.l.b16 %v480
    %v549 = vunpack.c.l.b16 %v481
    %v550 = vunpack.c.l.b16 %v482
    %v551 = vunpack.c.l.b16 %v483
    %v552 = vunpack.c.l.b16 %v484
    %v553 = vunpack.c.l.b16 %v485
    %v554 = vunpack.c.l.b16 %v486
    %v555 = vunpack.c.l.b16 %v487
    %v556 = vunpack.c.l.b16 %v488
    %v557 = vunpack.c.l.b16 %v489
    %v558 = vunpack.c.l.b16 %v490
    %v559 = vunpack.c.l.b16 %v491
    %v560 = vunpack.c.l.b16 %v492
    %v561 = vunpack.c.l.b16 %v493
    %v562 = vunpack.c.l.b16 %v494
    %v563 = vunpack.c.l.b16 %v495
    %v564 = vunpack.c.l.b16 %v496
    %v565 = vunpack.c.l.b16 %v497
    %v566 = vunpack.c.l.b16 %v498
    %v567 = vunpack.c.l.b16 %v499
    %v568 = vunpack.c.l.b16 %v500
    %v569 = vunpack.c.l.b16 %v501
    %v570 = vunpack.c.l.b16 %v502
    %v571 = vunpack.c.l.b16 %v503
    %v572 = vunpack.c.l.b16 %v504
    %v573 = vunpack.c.l.b16 %v505
    %v574 = vunpack.c.l.b16 %v506
    %v575 = vpack.c.b16 %v544, %v543
    %v576 = vpack.c.b16 %v546, %v545
    %v577 = vpack.c.b16 %v548, %v547
    %v578 = vpack.c.b16 %v550, %v549
    %v579 = vpack.c.b16 %v552, %v551
    %v580 = vpack.c.b16 %v554, %v553
    %v581 = vpack.c.b16 %v556, %v555
    %v582 = vpack.c.b16 %v558, %v557
    %v583 = vpack.c.b16 %v560, %v559
    %v584 = vpack.c.b16 %v562, %v561
    %v585 = vpack.c.b16 %v564, %v563
    %v586 = vpack.c.b16 %v566, %v565
    %v587 = vpack.c.b16 %v568, %v567
    %v588 = vpack.c.b16 %v570, %v569
    %v589 = vpack.c.b16 %v572, %v571
    %v590 = vpack.c.b16 %v574, %v573
    %607 = vmatpush.bf16.msra.mxu0 %v582
    %608 = vmatpush.bf16.msra.mxu0 %v581
    %609 = vmatpush.bf16.msra.mxu0 %v580
    %610 = vmatpush.bf16.msra.mxu0 %v579
    %611 = vmatpush.bf16.msra.mxu0 %v578
    %612 = vmatpush.bf16.msra.mxu0 %v577
    %613 = vmatpush.bf16.msra.mxu0 %v576
    %614 = vmatpush.bf16.msra.mxu0 %v575
    %615 = vmatmul.bf16.gmra.mxu0 %v473
    %v616 = vpop.f32.mrf.mxu0
    %v617 = vadd.f32 %v509, %v616
    %v618 = vpop.f32.mrf.mxu0
    %v619 = vadd.f32 %v509, %v618
    %620 = vdwg.mxu0
    %621 = vmatpush.bf16.msra.mxu0 %v590
    %622 = vmatpush.bf16.msra.mxu0 %v589
    %623 = vmatpush.bf16.msra.mxu0 %v588
    %624 = vmatpush.bf16.msra.mxu0 %v587
    %625 = vmatpush.bf16.msra.mxu0 %v586
    %626 = vmatpush.bf16.msra.mxu0 %v585
    %627 = vmatpush.bf16.msra.mxu0 %v584
    %628 = vmatpush.bf16.msra.mxu0 %v583
    %629 = vmatmul.bf16.gmra.mxu0 %v474
    %v630 = vpop.f32.mrf.mxu0
    %v631 = vadd.f32 %v617, %v630
    %v632 = vpop.f32.mrf.mxu0
    %v633 = vadd.f32 %v619, %v632
    %634 = vdwg.mxu0
    %635 = vst [vmem:[#allocation13] sm:$0xff] %v631
    %636 = vst [vmem:[#allocation13 + $0x8] sm:$0xff] %v633
    %v637 = vld [vmem:[#allocation5] sm:$0xff]
    %v638 = vpack.c.bf16 %v637, %v637
    %v639 = vld [vmem:[#allocation11] sm:$0xf]
    %v640 = vld [vmem:[#allocation11 + $0x4] sm:$0xf]
    %v641 = vld [vmem:[#allocation11 + $0x8] sm:$0xf]
    %v642 = vld [vmem:[#allocation11 + $0xc] sm:$0xf]
    %v643 = vld [vmem:[#allocation11 + $0x10] sm:$0xf]
    %v644 = vld [vmem:[#allocation11 + $0x14] sm:$0xf]
    %v645 = vld [vmem:[#allocation11 + $0x18] sm:$0xf]
    %v646 = vld [vmem:[#allocation11 + $0x1c] sm:$0xf]
    %v647 = vld [vmem:[#allocation11 + $0x20] sm:$0xf]
    %v648 = vld [vmem:[#allocation11 + $0x24] sm:$0xf]
    %v649 = vld [vmem:[#allocation11 + $0x28] sm:$0xf]
    %v650 = vld [vmem:[#allocation11 + $0x2c] sm:$0xf]
    %v651 = vld [vmem:[#allocation11 + $0x30] sm:$0xf]
    %v652 = vld [vmem:[#allocation11 + $0x34] sm:$0xf]
    %v653 = vld [vmem:[#allocation11 + $0x38] sm:$0xf]
    %v654 = vld [vmem:[#allocation11 + $0x3c] sm:$0xf]
    %v655 = vld [vmem:[%s9] sm:$0x1]
    %v657 = vperm.slane %v655, 0
    %v675 = vunpack.c.l.b16 %v639
    %v676 = vunpack.c.l.b16 %v640
    %v677 = vunpack.c.l.b16 %v641
    %v678 = vunpack.c.l.b16 %v642
    %v679 = vunpack.c.l.b16 %v643
    %v680 = vunpack.c.l.b16 %v644
    %v681 = vunpack.c.l.b16 %v645
    %v682 = vunpack.c.l.b16 %v646
    %v683 = vunpack.c.l.b16 %v647
    %v684 = vunpack.c.l.b16 %v648
    %v685 = vunpack.c.l.b16 %v649
    %v686 = vunpack.c.l.b16 %v650
    %v687 = vunpack.c.l.b16 %v651
    %v688 = vunpack.c.l.b16 %v652
    %v689 = vunpack.c.l.b16 %v653
    %v690 = vunpack.c.l.b16 %v654
    %v691 = vpack.c.b16 %v676, %v675
    %v692 = vpack.c.b16 %v678, %v677
    %v693 = vpack.c.b16 %v680, %v679
    %v694 = vpack.c.b16 %v682, %v681
    %v695 = vpack.c.b16 %v684, %v683
    %v696 = vpack.c.b16 %v686, %v685
    %v697 = vpack.c.b16 %v688, %v687
    %v698 = vpack.c.b16 %v690, %v689
    %707 = vmatpush.bf16.msra.mxu0 %v698
    %708 = vmatpush.bf16.msra.mxu0 %v697
    %709 = vmatpush.bf16.msra.mxu0 %v696
    %710 = vmatpush.bf16.msra.mxu0 %v695
    %711 = vmatpush.bf16.msra.mxu0 %v694
    %712 = vmatpush.bf16.msra.mxu0 %v693
    %713 = vmatpush.bf16.msra.mxu0 %v692
    %714 = vmatpush.bf16.msra.mxu0 %v691
    %715 = vmatmul.bf16.gmra.mxu0 %v638
    %v716 = vpop.f32.mrf.mxu0
    %v717 = vadd.f32 %v657, %v716
    %v718 = vpop.f32.mrf.mxu0
    %719 = vdwg.mxu0
    %720 = vst [vmem:[#allocation14] sm:$0xff] %v717
    // Predicated region
    $region66: #{tpu_custom_call.1} parent=1 // pred_check
      _
    $region67: #{tpu_custom_call.1} parent=1 // pred_check_branch
      %722 = sbr.rel (0) target = $region69
    $region68: #{tpu_custom_call.1} parent=1 // pred_region
      %724 = vsyncadd [#allocation4], 0
      %s725 = sshll.u32 [#allocation13], 4
      %s726 = int_to_ptr.vmem [resolvable:$true] %s725
      %s727 = sshll.u32 %s10, 4
      %s728 = int_to_ptr.hbm [resolvable:$true] %s727
      %733 = dma.vmem_to_hbm [thread:$0]  %s726, 256, %s728, [#allocation4], 128, 128, 8
    $region69: #{tpu_custom_call.1} parent=1 // pred_fallthru
      _
    // Predicated region
    $region70: #{tpu_custom_call.1} parent=1 // pred_check
      _
    $region71: #{tpu_custom_call.1} parent=1 // pred_check_branch
      %735 = sbr.rel (0) target = $region73
    $region72: #{tpu_custom_call.1} parent=1 // pred_region
      %737 = vsyncadd [#allocation15], 0
      %s739 = sshll.u32 [#allocation14], 4
      %s740 = int_to_ptr.vmem [resolvable:$true] %s739
      %s741 = sshll.u32 %s11, 4
      %s742 = int_to_ptr.hbm [resolvable:$true] %s741
      %744 = dma.vmem_to_hbm [thread:$0]  %s740, 128, %s742, [#allocation15]
    $region73: #{tpu_custom_call.1} parent=1 // pred_fallthru
      _
    // Predicated region
    $region74: #{tpu_custom_call.1} parent=1 // pred_check
      _
    $region75: #{tpu_custom_call.1} parent=1 // pred_check_branch
      %746 = sbr.rel (0) target = $region77
    $region76: #{tpu_custom_call.1} parent=1 // pred_region
      %748 = dma.done [#allocation4], 256
    $region77: #{tpu_custom_call.1} parent=1 // pred_fallthru
      _
    // Predicated region
    $region78: #{tpu_custom_call.1} parent=1 // pred_check
      _
    $region79: #{tpu_custom_call.1} parent=1 // pred_check_branch
      %750 = sbr.rel (0) target = $region81
    $region80: #{tpu_custom_call.1} parent=1 // pred_region
      %752 = dma.done [#allocation15], 128
    $region81: #{tpu_custom_call.1} parent=1 // pred_fallthru
      _
    %753 = vsyncpa [#allocation3], 1
    %754 = vsyncpa [#allocation6], 1
    %755 = vsyncpa [#allocation9], 1
    %756 = vsyncpa [#allocation12], 1
    %757 = vsyncpa [#allocation4], 1
    %758 = vsyncpa [#allocation15], 1

</llo_original>
